<compile_context>
chip_gen: v7x
topology: tpu7x:2x2x1
jax: 0.10.0
libtpu: 0.0.40
codegen_flags: <defaults>
</compile_context>

<pallas_src>
import math
import functools

import jax
import jax.numpy as jnp
from jax import lax
from jax.experimental import pallas as pl
from jax.experimental.pallas import tpu as pltpu


NEG_INF = -1e30  # large finite negative: avoids (-inf)-(-inf) NaNs in online softmax


def _vmem_limit_bytes():
    """Scoped-VMEM budget: ~3/4 of physical, capped (v5e/v6e ->64MiB, v7x ->48MiB)."""
    cap = 128 * 1024 * 1024
    try:
        cap = int(pltpu.get_tpu_info().vmem_capacity_bytes)
    except Exception:
        pass
    return min(64 * 1024 * 1024, (cap * 3) // 4)


VMEM_LIMIT = _vmem_limit_bytes()


def _pick_tile(dim, max_tile=512):
    """Largest tile <= max_tile that divides `dim` (prefers multiples of 128).

    Never returns the full dimension for large non-multiples (would blow VMEM);
    falls back to the largest divisor <= max_tile instead.
    """
    if dim <= max_tile:
        return dim
    for t in range(max_tile, 127, -128):
        if dim % t == 0:
            return t
    for t in range(max_tile, 0, -1):
        if dim % t == 0:
            return t
    return dim


# ----------------------------------------------------------------------------
# Fused QKV projection: reads x once, produces Q, K, V (bias added, Q pre-scaled
# via its weights).  Grid: (M-tiles, N-tiles, K-tiles); K (reduction) last.
# ----------------------------------------------------------------------------
def qkv_proj_kernel(x_ref, w_ref, b_ref, q_ref, k_ref, v_ref, acc_ref):
    @pl.when(pl.program_id(2) == 0)
    def _init():
        acc_ref[...] = jnp.zeros_like(acc_ref)

    x = x_ref[...]
    for p in range(3):                       # static unroll over {Q, K, V}
        acc_ref[p] += jnp.dot(x, w_ref[p], preferred_element_type=jnp.float32)

    @pl.when(pl.program_id(2) == pl.num_programs(2) - 1)
    def _finalize():
        for p, out in enumerate((q_ref, k_ref, v_ref)):
            out[...] = (acc_ref[p] + b_ref[p].astype(jnp.float32)).astype(out.dtype)


def qkv_projection(x, wqkv, bqkv, *, out_dtype=jnp.bfloat16):
    """x: (M, K); wqkv: (3, K, N); bqkv: (3, 1, N)  ->  three (M, N) arrays."""
    M, K = x.shape
    _, _, N = wqkv.shape
    tm, tn, tk = _pick_tile(M), _pick_tile(N), _pick_tile(K)

    out_sds = jax.ShapeDtypeStruct((M, N), out_dtype)
    out_spec = pl.BlockSpec((tm, tn), lambda i, j, kk: (i, j))
    return pl.pallas_call(
        qkv_proj_kernel,
        out_shape=(out_sds, out_sds, out_sds),
        grid_spec=pltpu.PrefetchScalarGridSpec(
            num_scalar_prefetch=0,
            grid=(M // tm, N // tn, K // tk),
            in_specs=[
                pl.BlockSpec((tm, tk), lambda i, j, kk: (i, kk)),
                pl.BlockSpec((3, tk, tn), lambda i, j, kk: (0, kk, j)),
                pl.BlockSpec((3, 1, tn), lambda i, j, kk: (0, 0, j)),
            ],
            out_specs=[out_spec, out_spec, out_spec],
            scratch_shapes=[pltpu.VMEM((3, tm, tn), jnp.float32)],
        ),
        compiler_params=pltpu.CompilerParams(
            dimension_semantics=("parallel", "parallel", "arbitrary"),
            vmem_limit_bytes=VMEM_LIMIT,
        ),
    )(x, wqkv, bqkv)


# ----------------------------------------------------------------------------
# Tiled linear (output projection): y = x @ W + b
# ----------------------------------------------------------------------------
def linear_kernel(x_ref, w_ref, b_ref, o_ref, acc_ref):
    @pl.when(pl.program_id(2) == 0)
    def _init():
        acc_ref[...] = jnp.zeros_like(acc_ref)

    acc_ref[...] += jnp.dot(x_ref[...], w_ref[...],
                            preferred_element_type=jnp.float32)

    @pl.when(pl.program_id(2) == pl.num_programs(2) - 1)
    def _finalize():
        o_ref[...] = (acc_ref[...] + b_ref[...].astype(jnp.float32)).astype(o_ref.dtype)


def linear(x, w, b, *, out_dtype=None):
    """x: (M, K), w: (K, N), b: (1, N)  ->  (M, N)."""
    M, K = x.shape
    _, N = w.shape
    out_dtype = x.dtype if out_dtype is None else out_dtype
    tm, tn, tk = _pick_tile(M), _pick_tile(N), _pick_tile(K)

    return pl.pallas_call(
        linear_kernel,
        out_shape=jax.ShapeDtypeStruct((M, N), out_dtype),
        grid_spec=pltpu.PrefetchScalarGridSpec(
            num_scalar_prefetch=0,
            grid=(M // tm, N // tn, K // tk),
            in_specs=[
                pl.BlockSpec((tm, tk), lambda i, j, kk: (i, kk)),
                pl.BlockSpec((tk, tn), lambda i, j, kk: (kk, j)),
                pl.BlockSpec((1, tn), lambda i, j, kk: (0, j)),
            ],
            out_specs=pl.BlockSpec((tm, tn), lambda i, j, kk: (i, j)),
            scratch_shapes=[pltpu.VMEM((tm, tn), jnp.float32)],
        ),
        compiler_params=pltpu.CompilerParams(
            dimension_semantics=("parallel", "parallel", "arbitrary"),
            vmem_limit_bytes=VMEM_LIMIT,
        ),
    )(x, w, b)


# ----------------------------------------------------------------------------
# Flash-style causal attention over (B, S, D) with the head split/merge fused in.
# Grid: (B, q-tiles).  KV loop runs inside the kernel with a causal trip count.
# ----------------------------------------------------------------------------
def flash_attn_kernel(q_ref, k_ref, v_ref, o_ref, *, tq, tkv, n_heads, head_dim):
    qt = pl.program_id(1)

    # Per-head Q slices (static lane offsets). Q was pre-scaled by 1/sqrt(hd).
    q_heads = [q_ref[:, h * head_dim:(h + 1) * head_dim] for h in range(n_heads)]

    # Strict upper-triangular mask for the single diagonal chunk (tq == tkv and
    # the diagonal chunk starts at the same sequence offset as the q tile).
    tri = (lax.broadcasted_iota(jnp.int32, (tq, tkv), 1)
           > lax.broadcasted_iota(jnp.int32, (tq, tkv), 0))

    def online_step(qh, k_blk, v_blk, carry, mask):
        m_prev, l_prev, acc_prev = carry
        # Contract on head_dim directly (A @ B^T on the MXU, no XLU transpose).
        s = lax.dot_general(qh, k_blk, (((1,), (1,)), ((), ())),
                            preferred_element_type=jnp.float32)        # (tq, tkv)
        if mask is not None:
            s = jnp.where(mask, NEG_INF, s)
        m_new = jnp.maximum(m_prev, jnp.max(s, axis=-1, keepdims=True))
        alpha = jnp.exp(m_prev - m_new)
        p = jnp.exp(s - m_new)
        l_new = alpha * l_prev + jnp.sum(p, axis=-1, keepdims=True)
        acc_new = alpha * acc_prev + jnp.dot(p.astype(v_blk.dtype), v_blk,
                                             preferred_element_type=jnp.float32)
        return m_new, l_new, acc_new

    def kv_chunk(j, carry, mask):
        start = pl.multiple_of(j * tkv, tkv)
        k_rows = k_ref[pl.ds(start, tkv), :]        # (tkv, D): loaded once, all heads
        v_rows = v_ref[pl.ds(start, tkv), :]
        return tuple(
            online_step(q_heads[h],
                        k_rows[:, h * head_dim:(h + 1) * head_dim],
                        v_rows[:, h * head_dim:(h + 1) * head_dim],
                        carry[h], mask)
            for h in range(n_heads))

    init = tuple((jnp.full((tq, 1), NEG_INF, jnp.float32),
                  jnp.zeros((tq, 1), jnp.float32),
                  jnp.zeros((tq, head_dim), jnp.float32))
                 for _ in range(n_heads))

    # Fully-visible chunks: no mask; the trip count stops at the causal diagonal,
    # so fully-masked chunks are never visited.
    carry = lax.fori_loop(0, qt, lambda j, c: kv_chunk(j, c, None), init)
    # Diagonal chunk with the triangular mask.
    carry = kv_chunk(qt, carry, tri)

    # Merge heads into one lane-dense (tq, D) output slab.  Exact divide: it runs
    # only once per q tile, avoiding approx-reciprocal error.
    for h in range(n_heads):
        _, l, acc = carry[h]
        o_ref[:, h * head_dim:(h + 1) * head_dim] = (acc / l).astype(o_ref.dtype)


def flash_attention(q, k, v, n_heads):
    """q, k, v: (B, S, D) bf16, Q pre-scaled.  Returns (B, S, D) bf16 (heads merged)."""
    B, S, D = q.shape
    hd = D // n_heads
    tq = _pick_tile(S)      # up to 512; bigger tiles amortize per-step overhead
    tkv = tq
    nq = S // tq

    kernel = functools.partial(flash_attn_kernel, tq=tq, tkv=tkv,
                               n_heads=n_heads, head_dim=hd)
    return pl.pallas_call(
        kernel,
        out_shape=jax.ShapeDtypeStruct((B, S, D), q.dtype),
        grid_spec=pltpu.PrefetchScalarGridSpec(
            num_scalar_prefetch=0,
            grid=(B, nq),
            in_specs=[
                pl.BlockSpec((None, tq, D), lambda b, i: (b, i, 0)),
                pl.BlockSpec((None, S, D), lambda b, i: (b, 0, 0)),   # resident per batch
                pl.BlockSpec((None, S, D), lambda b, i: (b, 0, 0)),
            ],
            out_specs=pl.BlockSpec((None, tq, D), lambda b, i: (b, i, 0)),
        ),
        compiler_params=pltpu.CompilerParams(
            dimension_semantics=("parallel", "parallel"),
            vmem_limit_bytes=VMEM_LIMIT,
        ),
    )(q, k, v)


# ----------------------------------------------------------------------------
# Full module forward
# ----------------------------------------------------------------------------
def multi_head_attention(x, params, n_heads):
    """x: (B, S, D) float32. params: torch-style weights (out, in) and biases (out,)."""
    B, S, D = x.shape
    hd = D // n_heads
    scale = 1.0 / math.sqrt(hd)

    xb = x.astype(jnp.bfloat16).reshape(B * S, D)

    # torch Linear weights are (out, in) -> transpose to (in, out); fold the
    # 1/sqrt(head_dim) score scale into the Q weights/bias (zero kernel cost).
    wq = (params["wq"].T * scale).astype(jnp.bfloat16)
    wk = params["wk"].T.astype(jnp.bfloat16)
    wv = params["wv"].T.astype(jnp.bfloat16)
    wo = params["wo"].T.astype(jnp.bfloat16)
    bq = (params["bq"] * scale).astype(jnp.float32).reshape(1, D)
    bk = params["bk"].astype(jnp.float32).reshape(1, D)
    bv = params["bv"].astype(jnp.float32).reshape(1, D)
    bo = params["bo"].astype(jnp.float32).reshape(1, D)

    wqkv = jnp.stack([wq, wk, wv], axis=0)          # (3, D, D)
    bqkv = jnp.stack([bq, bk, bv], axis=0)          # (3, 1, D)

    # Fused QKV projection: x streamed from HBM once.
    q, k, v = qkv_projection(xb, wqkv, bqkv, out_dtype=jnp.bfloat16)

    # Free metadata reshapes only; the head split/merge lives inside the kernel.
    attn = flash_attention(q.reshape(B, S, D), k.reshape(B, S, D),
                           v.reshape(B, S, D), n_heads)                 # (B, S, D)

    out = linear(attn.reshape(B * S, D), wo, bo, out_dtype=jnp.float32)
    return out.reshape(B, S, D)


# ----------------------------------------------------------------------------
# Pure-JAX f32 reference mirroring the PyTorch forward
# ----------------------------------------------------------------------------
def reference_mha(x, params, n_heads):
    B, S, D = x.shape
    hd = D // n_heads

    def lin(t, w, b):
        return jnp.einsum("bsd,od->bso", t, w) + b

    q = lin(x, params["wq"], params["bq"])
    k = lin(x, params["wk"], params["bk"])
    v = lin(x, params["wv"], params["bv"])

    def split(t):
        return t.reshape(B, S, n_heads, hd).transpose(0, 2, 1, 3)

    q, k, v = split(q), split(k), split(v)
    scores = jnp.einsum("bhqd,bhkd->bhqk", q, k) / math.sqrt(hd)
    mask = jnp.triu(jnp.ones((S, S), dtype=bool), k=1)
    scores = jnp.where(mask, -jnp.inf, scores)
    attn = jax.nn.softmax(scores, axis=-1)
    out = jnp.einsum("bhqk,bhkd->bhqd", attn, v)
    out = out.transpose(0, 2, 1, 3).reshape(B, S, D)
    return lin(out, params["wo"], params["bo"])


if __name__ == "__main__":
    B, S, D, H = 2, 8, 32, 4

    key = jax.random.PRNGKey(0)
    keys = jax.random.split(key, 9)
    bound = 1.0 / math.sqrt(D)  # mimic nn.Linear default-ish uniform init
    params = {
        "wq": jax.random.uniform(keys[0], (D, D), jnp.float32, -bound, bound),
        "wk": jax.random.uniform(keys[1], (D, D), jnp.float32, -bound, bound),
        "wv": jax.random.uniform(keys[2], (D, D), jnp.float32, -bound, bound),
        "wo": jax.random.uniform(keys[3], (D, D), jnp.float32, -bound, bound),
        "bq": jax.random.uniform(keys[4], (D,), jnp.float32, -bound, bound),
        "bk": jax.random.uniform(keys[5], (D,), jnp.float32, -bound, bound),
        "bv": jax.random.uniform(keys[6], (D,), jnp.float32, -bound, bound),
        "bo": jax.random.uniform(keys[7], (D,), jnp.float32, -bound, bound),
    }
    x = jax.random.normal(keys[8], (B, S, D), jnp.float32)

    mha = jax.jit(functools.partial(multi_head_attention, n_heads=H))
    out = mha(x, params)
    out = jax.block_until_ready(out)

    ref = reference_mha(x, params, H)
    assert out.shape == (B, S, D)
    # bf16 MXU operands vs. f32 reference -> loosened tolerance.
    assert jnp.allclose(out, ref, atol=5e-2, rtol=5e-2), "mismatch vs JAX reference"

    print("KERNEL_OK")
</pallas_src>

<mosaic_0001>
module attributes {stable_mosaic.version = 11 : i64} {
  func.func @flash_attn_kernel(%arg0: i32, %arg1: i32, %arg2: memref<1x8x32xbf16, #tpu.memory_space<vmem>>, %arg3: memref<1x8x32xbf16, #tpu.memory_space<vmem>>, %arg4: memref<1x8x32xbf16, #tpu.memory_space<vmem>>, %arg5: memref<1x8x32xbf16, #tpu.memory_space<vmem>>) attributes {dimension_semantics = [#tpu.dimension_semantics<parallel>, #tpu.dimension_semantics<parallel>], iteration_bounds = array<i64: 2, 1>, scalar_prefetch = 0 : i64, scratch_operands = 0 : i64, tpu.core_type = #tpu.core_type<tc>, window_params = [{transform_indices = @transform_0, window_bounds = array<i64: 1, 8, 32>}, {transform_indices = @transform_1, window_bounds = array<i64: 1, 8, 32>}, {transform_indices = @transform_2, window_bounds = array<i64: 1, 8, 32>}, {transform_indices = @transform_3, window_bounds = array<i64: 1, 8, 32>}]} {
    %c0 = arith.constant 0 : index
    %c0_0 = arith.constant 0 : index
    %c0_1 = arith.constant 0 : index
    %0 = vector.load %arg2[%c0, %c0_0, %c0_1] : memref<1x8x32xbf16, #tpu.memory_space<vmem>>, vector<1x8x8xbf16>
    %1 = vector.shape_cast %0 : vector<1x8x8xbf16> to vector<8x8xbf16>
    %c0_2 = arith.constant 0 : index
    %c0_3 = arith.constant 0 : index
    %c8 = arith.constant 8 : index
    %2 = vector.load %arg2[%c0_2, %c0_3, %c8] : memref<1x8x32xbf16, #tpu.memory_space<vmem>>, vector<1x8x8xbf16>
    %3 = vector.shape_cast %2 : vector<1x8x8xbf16> to vector<8x8xbf16>
    %c0_4 = arith.constant 0 : index
    %c0_5 = arith.constant 0 : index
    %c16 = arith.constant 16 : index
    %4 = vector.load %arg2[%c0_4, %c0_5, %c16] : memref<1x8x32xbf16, #tpu.memory_space<vmem>>, vector<1x8x8xbf16>
    %5 = vector.shape_cast %4 : vector<1x8x8xbf16> to vector<8x8xbf16>
    %c0_6 = arith.constant 0 : index
    %c0_7 = arith.constant 0 : index
    %c24 = arith.constant 24 : index
    %6 = vector.load %arg2[%c0_6, %c0_7, %c24] : memref<1x8x32xbf16, #tpu.memory_space<vmem>>, vector<1x8x8xbf16>
    %7 = vector.shape_cast %6 : vector<1x8x8xbf16> to vector<8x8xbf16>
    %8 = tpu.iota {dimensions = array<i32: 1>} : vector<8x8xi32>
    %9 = tpu.iota {dimensions = array<i32: 0>} : vector<8x8xi32>
    %10 = arith.cmpi sgt, %8, %9 : vector<8x8xi32>
    %cst = arith.constant -1.000000e+30 : f32
    %11 = vector.broadcast %cst : f32 to vector<8x1xf32>
    %cst_8 = arith.constant 0.000000e+00 : f32
    %12 = vector.broadcast %cst_8 : f32 to vector<8x1xf32>
    %cst_9 = arith.constant 0.000000e+00 : f32
    %13 = vector.broadcast %cst_9 : f32 to vector<8x8xf32>
    %cst_10 = arith.constant -1.000000e+30 : f32
    %14 = vector.broadcast %cst_10 : f32 to vector<8x1xf32>
    %cst_11 = arith.constant 0.000000e+00 : f32
    %15 = vector.broadcast %cst_11 : f32 to vector<8x1xf32>
    %cst_12 = arith.constant 0.000000e+00 : f32
    %16 = vector.broadcast %cst_12 : f32 to vector<8x8xf32>
    %cst_13 = arith.constant -1.000000e+30 : f32
    %17 = vector.broadcast %cst_13 : f32 to vector<8x1xf32>
    %cst_14 = arith.constant 0.000000e+00 : f32
    %18 = vector.broadcast %cst_14 : f32 to vector<8x1xf32>
    %cst_15 = arith.constant 0.000000e+00 : f32
    %19 = vector.broadcast %cst_15 : f32 to vector<8x8xf32>
    %cst_16 = arith.constant -1.000000e+30 : f32
    %20 = vector.broadcast %cst_16 : f32 to vector<8x1xf32>
    %cst_17 = arith.constant 0.000000e+00 : f32
    %21 = vector.broadcast %cst_17 : f32 to vector<8x1xf32>
    %cst_18 = arith.constant 0.000000e+00 : f32
    %22 = vector.broadcast %cst_18 : f32 to vector<8x8xf32>
    %c0_i32 = arith.constant 0 : i32
    %23 = arith.subi %arg1, %c0_i32 : i32
    %24 = arith.addi %c0_i32, %23 : i32
    %c1_i32 = arith.constant 1 : i32
    %25:12 = scf.for %arg6 = %c0_i32 to %24 step %c1_i32 iter_args(%arg7 = %11, %arg8 = %12, %arg9 = %13, %arg10 = %14, %arg11 = %15, %arg12 = %16, %arg13 = %17, %arg14 = %18, %arg15 = %19, %arg16 = %20, %arg17 = %21, %arg18 = %22) -> (vector<8x1xf32>, vector<8x1xf32>, vector<8x8xf32>, vector<8x1xf32>, vector<8x1xf32>, vector<8x8xf32>, vector<8x1xf32>, vector<8x1xf32>, vector<8x8xf32>, vector<8x1xf32>, vector<8x1xf32>, vector<8x8xf32>)  : i32 {
      %c8_i32_55 = arith.constant 8 : i32
      %146 = arith.muli %arg6, %c8_i32_55 : i32
      %147 = tpu.assume_multiple %146, 8 : i32
      %c0_56 = arith.constant 0 : index
      %148 = arith.index_cast %147 : i32 to index
      %c0_57 = arith.constant 0 : index
      %149 = vector.load %arg3[%c0_56, %148, %c0_57] : memref<1x8x32xbf16, #tpu.memory_space<vmem>>, vector<1x8x32xbf16>
      %150 = vector.shape_cast %149 : vector<1x8x32xbf16> to vector<8x32xbf16>
      %c0_58 = arith.constant 0 : index
      %151 = arith.index_cast %147 : i32 to index
      %c0_59 = arith.constant 0 : index
      %152 = vector.load %arg4[%c0_58, %151, %c0_59] : memref<1x8x32xbf16, #tpu.memory_space<vmem>>, vector<1x8x32xbf16>
      %153 = vector.shape_cast %152 : vector<1x8x32xbf16> to vector<8x32xbf16>
      %154 = vector.extract_strided_slice %150 {offsets = [0, 0], sizes = [8, 8], strides = [1, 1]} : vector<8x32xbf16> to vector<8x8xbf16>
      %155 = vector.extract_strided_slice %153 {offsets = [0, 0], sizes = [8, 8], strides = [1, 1]} : vector<8x32xbf16> to vector<8x8xbf16>
      %cst_60 = arith.constant dense<0.000000e+00> : vector<8x8xf32>
      %156 = tpu.matmul %1, %154, %cst_60 {dimension_numbers = #tpu.dot_dimension_numbers<[1], [1], [0], [0], [0, 0, 1, 0], [], []>} : vector<8x8xbf16>, vector<8x8xbf16>, vector<8x8xf32> -> vector<8x8xf32>
      %cst_61 = arith.constant dense<0xFF800000> : vector<8xf32>
      %157 = vector.multi_reduction <maximumf>, %156, %cst_61 [1] : vector<8x8xf32> to vector<8xf32>
      %158 = vector.shape_cast %157 : vector<8xf32> to vector<8x1xf32>
      %159 = arith.maximumf %arg7, %158 : vector<8x1xf32>
      %160 = arith.subf %arg7, %159 : vector<8x1xf32>
      %161 = math.exp %160 : vector<8x1xf32>
      %162 = vector.broadcast %159 : vector<8x1xf32> to vector<8x8xf32>
      %163 = arith.subf %156, %162 : vector<8x8xf32>
      %164 = math.exp %163 : vector<8x8xf32>
      %165 = arith.mulf %161, %arg8 : vector<8x1xf32>
      %cst_62 = arith.constant dense<0.000000e+00> : vector<8xf32>
      %166 = vector.multi_reduction <add>, %164, %cst_62 [1] : vector<8x8xf32> to vector<8xf32>
      %167 = vector.shape_cast %166 : vector<8xf32> to vector<8x1xf32>
      %168 = arith.addf %165, %167 : vector<8x1xf32>
      %169 = vector.broadcast %161 : vector<8x1xf32> to vector<8x8xf32>
      %170 = arith.mulf %169, %arg9 : vector<8x8xf32>
      %171 = arith.truncf %164 : vector<8x8xf32> to vector<8x8xbf16>
      %cst_63 = arith.constant dense<0.000000e+00> : vector<8x8xf32>
      %172 = tpu.matmul %171, %155, %cst_63 {dimension_numbers = #tpu.dot_dimension_numbers<[1], [0], [0], [1], [0, 0, 1, 1], [], []>} : vector<8x8xbf16>, vector<8x8xbf16>, vector<8x8xf32> -> vector<8x8xf32>
      %173 = arith.addf %170, %172 : vector<8x8xf32>
      %174 = vector.extract_strided_slice %150 {offsets = [0, 8], sizes = [8, 8], strides = [1, 1]} : vector<8x32xbf16> to vector<8x8xbf16>
      %175 = vector.extract_strided_slice %153 {offsets = [0, 8], sizes = [8, 8], strides = [1, 1]} : vector<8x32xbf16> to vector<8x8xbf16>
      %cst_64 = arith.constant dense<0.000000e+00> : vector<8x8xf32>
      %176 = tpu.matmul %3, %174, %cst_64 {dimension_numbers = #tpu.dot_dimension_numbers<[1], [1], [0], [0], [0, 0, 1, 0], [], []>} : vector<8x8xbf16>, vector<8x8xbf16>, vector<8x8xf32> -> vector<8x8xf32>
      %cst_65 = arith.constant dense<0xFF800000> : vector<8xf32>
      %177 = vector.multi_reduction <maximumf>, %176, %cst_65 [1] : vector<8x8xf32> to vector<8xf32>
      %178 = vector.shape_cast %177 : vector<8xf32> to vector<8x1xf32>
      %179 = arith.maximumf %arg10, %178 : vector<8x1xf32>
      %180 = arith.subf %arg10, %179 : vector<8x1xf32>
      %181 = math.exp %180 : vector<8x1xf32>
      %182 = vector.broadcast %179 : vector<8x1xf32> to vector<8x8xf32>
      %183 = arith.subf %176, %182 : vector<8x8xf32>
      %184 = math.exp %183 : vector<8x8xf32>
      %185 = arith.mulf %181, %arg11 : vector<8x1xf32>
      %cst_66 = arith.constant dense<0.000000e+00> : vector<8xf32>
      %186 = vector.multi_reduction <add>, %184, %cst_66 [1] : vector<8x8xf32> to vector<8xf32>
      %187 = vector.shape_cast %186 : vector<8xf32> to vector<8x1xf32>
      %188 = arith.addf %185, %187 : vector<8x1xf32>
      %189 = vector.broadcast %181 : vector<8x1xf32> to vector<8x8xf32>
      %190 = arith.mulf %189, %arg12 : vector<8x8xf32>
      %191 = arith.truncf %184 : vector<8x8xf32> to vector<8x8xbf16>
      %cst_67 = arith.constant dense<0.000000e+00> : vector<8x8xf32>
      %192 = tpu.matmul %191, %175, %cst_67 {dimension_numbers = #tpu.dot_dimension_numbers<[1], [0], [0], [1], [0, 0, 1, 1], [], []>} : vector<8x8xbf16>, vector<8x8xbf16>, vector<8x8xf32> -> vector<8x8xf32>
      %193 = arith.addf %190, %192 : vector<8x8xf32>
      %194 = vector.extract_strided_slice %150 {offsets = [0, 16], sizes = [8, 8], strides = [1, 1]} : vector<8x32xbf16> to vector<8x8xbf16>
      %195 = vector.extract_strided_slice %153 {offsets = [0, 16], sizes = [8, 8], strides = [1, 1]} : vector<8x32xbf16> to vector<8x8xbf16>
      %cst_68 = arith.constant dense<0.000000e+00> : vector<8x8xf32>
      %196 = tpu.matmul %5, %194, %cst_68 {dimension_numbers = #tpu.dot_dimension_numbers<[1], [1], [0], [0], [0, 0, 1, 0], [], []>} : vector<8x8xbf16>, vector<8x8xbf16>, vector<8x8xf32> -> vector<8x8xf32>
      %cst_69 = arith.constant dense<0xFF800000> : vector<8xf32>
      %197 = vector.multi_reduction <maximumf>, %196, %cst_69 [1] : vector<8x8xf32> to vector<8xf32>
      %198 = vector.shape_cast %197 : vector<8xf32> to vector<8x1xf32>
      %199 = arith.maximumf %arg13, %198 : vector<8x1xf32>
      %200 = arith.subf %arg13, %199 : vector<8x1xf32>
      %201 = math.exp %200 : vector<8x1xf32>
      %202 = vector.broadcast %199 : vector<8x1xf32> to vector<8x8xf32>
      %203 = arith.subf %196, %202 : vector<8x8xf32>
      %204 = math.exp %203 : vector<8x8xf32>
      %205 = arith.mulf %201, %arg14 : vector<8x1xf32>
      %cst_70 = arith.constant dense<0.000000e+00> : vector<8xf32>
      %206 = vector.multi_reduction <add>, %204, %cst_70 [1] : vector<8x8xf32> to vector<8xf32>
      %207 = vector.shape_cast %206 : vector<8xf32> to vector<8x1xf32>
      %208 = arith.addf %205, %207 : vector<8x1xf32>
      %209 = vector.broadcast %201 : vector<8x1xf32> to vector<8x8xf32>
      %210 = arith.mulf %209, %arg15 : vector<8x8xf32>
      %211 = arith.truncf %204 : vector<8x8xf32> to vector<8x8xbf16>
      %cst_71 = arith.constant dense<0.000000e+00> : vector<8x8xf32>
      %212 = tpu.matmul %211, %195, %cst_71 {dimension_numbers = #tpu.dot_dimension_numbers<[1], [0], [0], [1], [0, 0, 1, 1], [], []>} : vector<8x8xbf16>, vector<8x8xbf16>, vector<8x8xf32> -> vector<8x8xf32>
      %213 = arith.addf %210, %212 : vector<8x8xf32>
      %214 = vector.extract_strided_slice %150 {offsets = [0, 24], sizes = [8, 8], strides = [1, 1]} : vector<8x32xbf16> to vector<8x8xbf16>
      %215 = vector.extract_strided_slice %153 {offsets = [0, 24], sizes = [8, 8], strides = [1, 1]} : vector<8x32xbf16> to vector<8x8xbf16>
      %cst_72 = arith.constant dense<0.000000e+00> : vector<8x8xf32>
      %216 = tpu.matmul %7, %214, %cst_72 {dimension_numbers = #tpu.dot_dimension_numbers<[1], [1], [0], [0], [0, 0, 1, 0], [], []>} : vector<8x8xbf16>, vector<8x8xbf16>, vector<8x8xf32> -> vector<8x8xf32>
      %cst_73 = arith.constant dense<0xFF800000> : vector<8xf32>
      %217 = vector.multi_reduction <maximumf>, %216, %cst_73 [1] : vector<8x8xf32> to vector<8xf32>
      %218 = vector.shape_cast %217 : vector<8xf32> to vector<8x1xf32>
      %219 = arith.maximumf %arg16, %218 : vector<8x1xf32>
      %220 = arith.subf %arg16, %219 : vector<8x1xf32>
      %221 = math.exp %220 : vector<8x1xf32>
      %222 = vector.broadcast %219 : vector<8x1xf32> to vector<8x8xf32>
      %223 = arith.subf %216, %222 : vector<8x8xf32>
      %224 = math.exp %223 : vector<8x8xf32>
      %225 = arith.mulf %221, %arg17 : vector<8x1xf32>
      %cst_74 = arith.constant dense<0.000000e+00> : vector<8xf32>
      %226 = vector.multi_reduction <add>, %224, %cst_74 [1] : vector<8x8xf32> to vector<8xf32>
      %227 = vector.shape_cast %226 : vector<8xf32> to vector<8x1xf32>
      %228 = arith.addf %225, %227 : vector<8x1xf32>
      %229 = vector.broadcast %221 : vector<8x1xf32> to vector<8x8xf32>
      %230 = arith.mulf %229, %arg18 : vector<8x8xf32>
      %231 = arith.truncf %224 : vector<8x8xf32> to vector<8x8xbf16>
      %cst_75 = arith.constant dense<0.000000e+00> : vector<8x8xf32>
      %232 = tpu.matmul %231, %215, %cst_75 {dimension_numbers = #tpu.dot_dimension_numbers<[1], [0], [0], [1], [0, 0, 1, 1], [], []>} : vector<8x8xbf16>, vector<8x8xbf16>, vector<8x8xf32> -> vector<8x8xf32>
      %233 = arith.addf %230, %232 : vector<8x8xf32>
      scf.yield %159, %168, %173, %179, %188, %193, %199, %208, %213, %219, %228, %233 : vector<8x1xf32>, vector<8x1xf32>, vector<8x8xf32>, vector<8x1xf32>, vector<8x1xf32>, vector<8x8xf32>, vector<8x1xf32>, vector<8x1xf32>, vector<8x8xf32>, vector<8x1xf32>, vector<8x1xf32>, vector<8x8xf32>
    }
    %c8_i32 = arith.constant 8 : i32
    %26 = arith.muli %arg1, %c8_i32 : i32
    %27 = tpu.assume_multiple %26, 8 : i32
    %c0_19 = arith.constant 0 : index
    %28 = arith.index_cast %27 : i32 to index
    %c0_20 = arith.constant 0 : index
    %29 = vector.load %arg3[%c0_19, %28, %c0_20] : memref<1x8x32xbf16, #tpu.memory_space<vmem>>, vector<1x8x32xbf16>
    %30 = vector.shape_cast %29 : vector<1x8x32xbf16> to vector<8x32xbf16>
    %c0_21 = arith.constant 0 : index
    %31 = arith.index_cast %27 : i32 to index
    %c0_22 = arith.constant 0 : index
    %32 = vector.load %arg4[%c0_21, %31, %c0_22] : memref<1x8x32xbf16, #tpu.memory_space<vmem>>, vector<1x8x32xbf16>
    %33 = vector.shape_cast %32 : vector<1x8x32xbf16> to vector<8x32xbf16>
    %34 = vector.extract_strided_slice %30 {offsets = [0, 0], sizes = [8, 8], strides = [1, 1]} : vector<8x32xbf16> to vector<8x8xbf16>
    %35 = vector.extract_strided_slice %33 {offsets = [0, 0], sizes = [8, 8], strides = [1, 1]} : vector<8x32xbf16> to vector<8x8xbf16>
    %cst_23 = arith.constant dense<0.000000e+00> : vector<8x8xf32>
    %36 = tpu.matmul %1, %34, %cst_23 {dimension_numbers = #tpu.dot_dimension_numbers<[1], [1], [0], [0], [0, 0, 1, 0], [], []>} : vector<8x8xbf16>, vector<8x8xbf16>, vector<8x8xf32> -> vector<8x8xf32>
    %cst_24 = arith.constant -1.000000e+30 : f32
    %37 = vector.broadcast %cst_24 : f32 to vector<8x8xf32>
    %38 = arith.select %10, %37, %36 : vector<8x8xi1>, vector<8x8xf32>
    %cst_25 = arith.constant dense<0xFF800000> : vector<8xf32>
    %39 = vector.multi_reduction <maximumf>, %38, %cst_25 [1] : vector<8x8xf32> to vector<8xf32>
    %40 = vector.shape_cast %39 : vector<8xf32> to vector<8x1xf32>
    %41 = arith.maximumf %25#0, %40 : vector<8x1xf32>
    %42 = arith.subf %25#0, %41 : vector<8x1xf32>
    %43 = math.exp %42 : vector<8x1xf32>
    %44 = vector.broadcast %41 : vector<8x1xf32> to vector<8x8xf32>
    %45 = arith.subf %38, %44 : vector<8x8xf32>
    %46 = math.exp %45 : vector<8x8xf32>
    %47 = arith.mulf %43, %25#1 : vector<8x1xf32>
    %cst_26 = arith.constant dense<0.000000e+00> : vector<8xf32>
    %48 = vector.multi_reduction <add>, %46, %cst_26 [1] : vector<8x8xf32> to vector<8xf32>
    %49 = vector.shape_cast %48 : vector<8xf32> to vector<8x1xf32>
    %50 = arith.addf %47, %49 : vector<8x1xf32>
    %51 = vector.broadcast %43 : vector<8x1xf32> to vector<8x8xf32>
    %52 = arith.mulf %51, %25#2 : vector<8x8xf32>
    %53 = arith.truncf %46 : vector<8x8xf32> to vector<8x8xbf16>
    %cst_27 = arith.constant dense<0.000000e+00> : vector<8x8xf32>
    %54 = tpu.matmul %53, %35, %cst_27 {dimension_numbers = #tpu.dot_dimension_numbers<[1], [0], [0], [1], [0, 0, 1, 1], [], []>} : vector<8x8xbf16>, vector<8x8xbf16>, vector<8x8xf32> -> vector<8x8xf32>
    %55 = arith.addf %52, %54 : vector<8x8xf32>
    %56 = vector.extract_strided_slice %30 {offsets = [0, 8], sizes = [8, 8], strides = [1, 1]} : vector<8x32xbf16> to vector<8x8xbf16>
    %57 = vector.extract_strided_slice %33 {offsets = [0, 8], sizes = [8, 8], strides = [1, 1]} : vector<8x32xbf16> to vector<8x8xbf16>
    %cst_28 = arith.constant dense<0.000000e+00> : vector<8x8xf32>
    %58 = tpu.matmul %3, %56, %cst_28 {dimension_numbers = #tpu.dot_dimension_numbers<[1], [1], [0], [0], [0, 0, 1, 0], [], []>} : vector<8x8xbf16>, vector<8x8xbf16>, vector<8x8xf32> -> vector<8x8xf32>
    %cst_29 = arith.constant -1.000000e+30 : f32
    %59 = vector.broadcast %cst_29 : f32 to vector<8x8xf32>
    %60 = arith.select %10, %59, %58 : vector<8x8xi1>, vector<8x8xf32>
    %cst_30 = arith.constant dense<0xFF800000> : vector<8xf32>
    %61 = vector.multi_reduction <maximumf>, %60, %cst_30 [1] : vector<8x8xf32> to vector<8xf32>
    %62 = vector.shape_cast %61 : vector<8xf32> to vector<8x1xf32>
    %63 = arith.maximumf %25#3, %62 : vector<8x1xf32>
    %64 = arith.subf %25#3, %63 : vector<8x1xf32>
    %65 = math.exp %64 : vector<8x1xf32>
    %66 = vector.broadcast %63 : vector<8x1xf32> to vector<8x8xf32>
    %67 = arith.subf %60, %66 : vector<8x8xf32>
    %68 = math.exp %67 : vector<8x8xf32>
    %69 = arith.mulf %65, %25#4 : vector<8x1xf32>
    %cst_31 = arith.constant dense<0.000000e+00> : vector<8xf32>
    %70 = vector.multi_reduction <add>, %68, %cst_31 [1] : vector<8x8xf32> to vector<8xf32>
    %71 = vector.shape_cast %70 : vector<8xf32> to vector<8x1xf32>
    %72 = arith.addf %69, %71 : vector<8x1xf32>
    %73 = vector.broadcast %65 : vector<8x1xf32> to vector<8x8xf32>
    %74 = arith.mulf %73, %25#5 : vector<8x8xf32>
    %75 = arith.truncf %68 : vector<8x8xf32> to vector<8x8xbf16>
    %cst_32 = arith.constant dense<0.000000e+00> : vector<8x8xf32>
    %76 = tpu.matmul %75, %57, %cst_32 {dimension_numbers = #tpu.dot_dimension_numbers<[1], [0], [0], [1], [0, 0, 1, 1], [], []>} : vector<8x8xbf16>, vector<8x8xbf16>, vector<8x8xf32> -> vector<8x8xf32>
    %77 = arith.addf %74, %76 : vector<8x8xf32>
    %78 = vector.extract_strided_slice %30 {offsets = [0, 16], sizes = [8, 8], strides = [1, 1]} : vector<8x32xbf16> to vector<8x8xbf16>
    %79 = vector.extract_strided_slice %33 {offsets = [0, 16], sizes = [8, 8], strides = [1, 1]} : vector<8x32xbf16> to vector<8x8xbf16>
    %cst_33 = arith.constant dense<0.000000e+00> : vector<8x8xf32>
    %80 = tpu.matmul %5, %78, %cst_33 {dimension_numbers = #tpu.dot_dimension_numbers<[1], [1], [0], [0], [0, 0, 1, 0], [], []>} : vector<8x8xbf16>, vector<8x8xbf16>, vector<8x8xf32> -> vector<8x8xf32>
    %cst_34 = arith.constant -1.000000e+30 : f32
    %81 = vector.broadcast %cst_34 : f32 to vector<8x8xf32>
    %82 = arith.select %10, %81, %80 : vector<8x8xi1>, vector<8x8xf32>
    %cst_35 = arith.constant dense<0xFF800000> : vector<8xf32>
    %83 = vector.multi_reduction <maximumf>, %82, %cst_35 [1] : vector<8x8xf32> to vector<8xf32>
    %84 = vector.shape_cast %83 : vector<8xf32> to vector<8x1xf32>
    %85 = arith.maximumf %25#6, %84 : vector<8x1xf32>
    %86 = arith.subf %25#6, %85 : vector<8x1xf32>
    %87 = math.exp %86 : vector<8x1xf32>
    %88 = vector.broadcast %85 : vector<8x1xf32> to vector<8x8xf32>
    %89 = arith.subf %82, %88 : vector<8x8xf32>
    %90 = math.exp %89 : vector<8x8xf32>
    %91 = arith.mulf %87, %25#7 : vector<8x1xf32>
    %cst_36 = arith.constant dense<0.000000e+00> : vector<8xf32>
    %92 = vector.multi_reduction <add>, %90, %cst_36 [1] : vector<8x8xf32> to vector<8xf32>
    %93 = vector.shape_cast %92 : vector<8xf32> to vector<8x1xf32>
    %94 = arith.addf %91, %93 : vector<8x1xf32>
    %95 = vector.broadcast %87 : vector<8x1xf32> to vector<8x8xf32>
    %96 = arith.mulf %95, %25#8 : vector<8x8xf32>
    %97 = arith.truncf %90 : vector<8x8xf32> to vector<8x8xbf16>
    %cst_37 = arith.constant dense<0.000000e+00> : vector<8x8xf32>
    %98 = tpu.matmul %97, %79, %cst_37 {dimension_numbers = #tpu.dot_dimension_numbers<[1], [0], [0], [1], [0, 0, 1, 1], [], []>} : vector<8x8xbf16>, vector<8x8xbf16>, vector<8x8xf32> -> vector<8x8xf32>
    %99 = arith.addf %96, %98 : vector<8x8xf32>
    %100 = vector.extract_strided_slice %30 {offsets = [0, 24], sizes = [8, 8], strides = [1, 1]} : vector<8x32xbf16> to vector<8x8xbf16>
    %101 = vector.extract_strided_slice %33 {offsets = [0, 24], sizes = [8, 8], strides = [1, 1]} : vector<8x32xbf16> to vector<8x8xbf16>
    %cst_38 = arith.constant dense<0.000000e+00> : vector<8x8xf32>
    %102 = tpu.matmul %7, %100, %cst_38 {dimension_numbers = #tpu.dot_dimension_numbers<[1], [1], [0], [0], [0, 0, 1, 0], [], []>} : vector<8x8xbf16>, vector<8x8xbf16>, vector<8x8xf32> -> vector<8x8xf32>
    %cst_39 = arith.constant -1.000000e+30 : f32
    %103 = vector.broadcast %cst_39 : f32 to vector<8x8xf32>
    %104 = arith.select %10, %103, %102 : vector<8x8xi1>, vector<8x8xf32>
    %cst_40 = arith.constant dense<0xFF800000> : vector<8xf32>
    %105 = vector.multi_reduction <maximumf>, %104, %cst_40 [1] : vector<8x8xf32> to vector<8xf32>
    %106 = vector.shape_cast %105 : vector<8xf32> to vector<8x1xf32>
    %107 = arith.maximumf %25#9, %106 : vector<8x1xf32>
    %108 = arith.subf %25#9, %107 : vector<8x1xf32>
    %109 = math.exp %108 : vector<8x1xf32>
    %110 = vector.broadcast %107 : vector<8x1xf32> to vector<8x8xf32>
    %111 = arith.subf %104, %110 : vector<8x8xf32>
    %112 = math.exp %111 : vector<8x8xf32>
    %113 = arith.mulf %109, %25#10 : vector<8x1xf32>
    %cst_41 = arith.constant dense<0.000000e+00> : vector<8xf32>
    %114 = vector.multi_reduction <add>, %112, %cst_41 [1] : vector<8x8xf32> to vector<8xf32>
    %115 = vector.shape_cast %114 : vector<8xf32> to vector<8x1xf32>
    %116 = arith.addf %113, %115 : vector<8x1xf32>
    %117 = vector.broadcast %109 : vector<8x1xf32> to vector<8x8xf32>
    %118 = arith.mulf %117, %25#11 : vector<8x8xf32>
    %119 = arith.truncf %112 : vector<8x8xf32> to vector<8x8xbf16>
    %cst_42 = arith.constant dense<0.000000e+00> : vector<8x8xf32>
    %120 = tpu.matmul %119, %101, %cst_42 {dimension_numbers = #tpu.dot_dimension_numbers<[1], [0], [0], [1], [0, 0, 1, 1], [], []>} : vector<8x8xbf16>, vector<8x8xbf16>, vector<8x8xf32> -> vector<8x8xf32>
    %121 = arith.addf %118, %120 : vector<8x8xf32>
    %122 = vector.broadcast %50 : vector<8x1xf32> to vector<8x8xf32>
    %123 = arith.divf %55, %122 : vector<8x8xf32>
    %124 = arith.truncf %123 : vector<8x8xf32> to vector<8x8xbf16>
    %c0_43 = arith.constant 0 : index
    %c0_44 = arith.constant 0 : index
    %c0_45 = arith.constant 0 : index
    %125 = vector.load %arg5[%c0_43, %c0_44, %c0_45] : memref<1x8x32xbf16, #tpu.memory_space<vmem>>, vector<1x8x8xbf16>
    %126 = vector.shape_cast %125 : vector<1x8x8xbf16> to vector<8x8xbf16>
    %127 = vector.shape_cast %124 : vector<8x8xbf16> to vector<1x8x8xbf16>
    tpu.vector_store %arg5[%c0_43, %c0_44, %c0_45], %127 {strides = array<i32>} : memref<1x8x32xbf16, #tpu.memory_space<vmem>>, vector<1x8x8xbf16>,
    %128 = vector.broadcast %72 : vector<8x1xf32> to vector<8x8xf32>
    %129 = arith.divf %77, %128 : vector<8x8xf32>
    %130 = arith.truncf %129 : vector<8x8xf32> to vector<8x8xbf16>
    %c0_46 = arith.constant 0 : index
    %c0_47 = arith.constant 0 : index
    %c8_48 = arith.constant 8 : index
    %131 = vector.load %arg5[%c0_46, %c0_47, %c8_48] : memref<1x8x32xbf16, #tpu.memory_space<vmem>>, vector<1x8x8xbf16>
    %132 = vector.shape_cast %131 : vector<1x8x8xbf16> to vector<8x8xbf16>
    %133 = vector.shape_cast %130 : vector<8x8xbf16> to vector<1x8x8xbf16>
    tpu.vector_store %arg5[%c0_46, %c0_47, %c8_48], %133 {strides = array<i32>} : memref<1x8x32xbf16, #tpu.memory_space<vmem>>, vector<1x8x8xbf16>,
    %134 = vector.broadcast %94 : vector<8x1xf32> to vector<8x8xf32>
    %135 = arith.divf %99, %134 : vector<8x8xf32>
    %136 = arith.truncf %135 : vector<8x8xf32> to vector<8x8xbf16>
    %c0_49 = arith.constant 0 : index
    %c0_50 = arith.constant 0 : index
    %c16_51 = arith.constant 16 : index
    %137 = vector.load %arg5[%c0_49, %c0_50, %c16_51] : memref<1x8x32xbf16, #tpu.memory_space<vmem>>, vector<1x8x8xbf16>
    %138 = vector.shape_cast %137 : vector<1x8x8xbf16> to vector<8x8xbf16>
    %139 = vector.shape_cast %136 : vector<8x8xbf16> to vector<1x8x8xbf16>
    tpu.vector_store %arg5[%c0_49, %c0_50, %c16_51], %139 {strides = array<i32>} : memref<1x8x32xbf16, #tpu.memory_space<vmem>>, vector<1x8x8xbf16>,
    %140 = vector.broadcast %116 : vector<8x1xf32> to vector<8x8xf32>
    %141 = arith.divf %121, %140 : vector<8x8xf32>
    %142 = arith.truncf %141 : vector<8x8xf32> to vector<8x8xbf16>
    %c0_52 = arith.constant 0 : index
    %c0_53 = arith.constant 0 : index
    %c24_54 = arith.constant 24 : index
    %143 = vector.load %arg5[%c0_52, %c0_53, %c24_54] : memref<1x8x32xbf16, #tpu.memory_space<vmem>>, vector<1x8x8xbf16>
    %144 = vector.shape_cast %143 : vector<1x8x8xbf16> to vector<8x8xbf16>
    %145 = vector.shape_cast %142 : vector<8x8xbf16> to vector<1x8x8xbf16>
    tpu.vector_store %arg5[%c0_52, %c0_53, %c24_54], %145 {strides = array<i32>} : memref<1x8x32xbf16, #tpu.memory_space<vmem>>, vector<1x8x8xbf16>,
    return
  }
  func.func @transform_0(%arg0: i32, %arg1: i32) -> (i32, i32, i32) {
    %c0_i32 = arith.constant 0 : i32
    %c0_i32_0 = arith.constant 0 : i32
    return %arg0, %arg1, %c0_i32 : i32, i32, i32
  }
  func.func @transform_1(%arg0: i32, %arg1: i32) -> (i32, i32, i32) {
    %c0_i32 = arith.constant 0 : i32
    %c0_i32_0 = arith.constant 0 : i32
    %c0_i32_1 = arith.constant 0 : i32
    return %arg0, %c0_i32, %c0_i32_0 : i32, i32, i32
  }
  func.func @transform_2(%arg0: i32, %arg1: i32) -> (i32, i32, i32) {
    %c0_i32 = arith.constant 0 : i32
    %c0_i32_0 = arith.constant 0 : i32
    %c0_i32_1 = arith.constant 0 : i32
    return %arg0, %c0_i32, %c0_i32_0 : i32, i32, i32
  }
  func.func @transform_3(%arg0: i32, %arg1: i32) -> (i32, i32, i32) {
    %c0_i32 = arith.constant 0 : i32
    %c0_i32_0 = arith.constant 0 : i32
    return %arg0, %arg1, %c0_i32 : i32, i32, i32
  }
}

module attributes {stable_mosaic.version = 11 : i64} {
  func.func @qkv_proj_kernel(%arg0: i32, %arg1: i32, %arg2: i32, %arg3: memref<16x32xbf16, #tpu.memory_space<vmem>>, %arg4: memref<3x32x32xbf16, #tpu.memory_space<vmem>>, %arg5: memref<3x1x32xf32, #tpu.memory_space<vmem>>, %arg6: memref<16x32xbf16, #tpu.memory_space<vmem>>, %arg7: memref<16x32xbf16, #tpu.memory_space<vmem>>, %arg8: memref<16x32xbf16, #tpu.memory_space<vmem>>, %arg9: memref<3x16x32xf32, #tpu.memory_space<vmem>>) attributes {dimension_semantics = [#tpu.dimension_semantics<parallel>, #tpu.dimension_semantics<parallel>, #tpu.dimension_semantics<arbitrary>], iteration_bounds = array<i64: 1, 1, 1>, scalar_prefetch = 0 : i64, scratch_operands = 1 : i64, tpu.core_type = #tpu.core_type<tc>, window_params = [{transform_indices = @transform_0, window_bounds = array<i64: 16, 32>}, {transform_indices = @transform_1, window_bounds = array<i64: 3, 32, 32>}, {transform_indices = @transform_2, window_bounds = array<i64: 3, 1, 32>}, {transform_indices = @transform_3, window_bounds = array<i64: 16, 32>}, {transform_indices = @transform_4, window_bounds = array<i64: 16, 32>}, {transform_indices = @transform_5, window_bounds = array<i64: 16, 32>}]} {
    %c0_i32 = arith.constant 0 : i32
    %0 = arith.cmpi eq, %arg2, %c0_i32 : i32
    %1 = arith.extui %0 : i1 to i32
    %c0_i32_0 = arith.constant 0 : i32
    %2 = arith.cmpi ne, %1, %c0_i32_0 : i32
    scf.if %2 {
      %cst_31 = arith.constant 0.000000e+00 : f32
      %34 = vector.broadcast %cst_31 : f32 to vector<3x16x32xf32>
      %c0_32 = arith.constant 0 : index
      %c0_33 = arith.constant 0 : index
      %c0_34 = arith.constant 0 : index
      %35 = vector.load %arg9[%c0_32, %c0_33, %c0_34] : memref<3x16x32xf32, #tpu.memory_space<vmem>>, vector<3x16x32xf32>
      tpu.vector_store %arg9[%c0_32, %c0_33, %c0_34], %34 {strides = array<i32>} : memref<3x16x32xf32, #tpu.memory_space<vmem>>, vector<3x16x32xf32>,
    } else {
    }
    %c0 = arith.constant 0 : index
    %c0_1 = arith.constant 0 : index
    %3 = vector.load %arg3[%c0, %c0_1] : memref<16x32xbf16, #tpu.memory_space<vmem>>, vector<16x32xbf16>
    %c0_2 = arith.constant 0 : index
    %c0_3 = arith.constant 0 : index
    %c0_4 = arith.constant 0 : index
    %4 = vector.load %arg9[%c0_2, %c0_3, %c0_4] : memref<3x16x32xf32, #tpu.memory_space<vmem>>, vector<1x16x32xf32>
    %5 = vector.shape_cast %4 : vector<1x16x32xf32> to vector<16x32xf32>
    %c0_5 = arith.constant 0 : index
    %c0_6 = arith.constant 0 : index
    %c0_7 = arith.constant 0 : index
    %6 = vector.load %arg4[%c0_5, %c0_6, %c0_7] : memref<3x32x32xbf16, #tpu.memory_space<vmem>>, vector<1x32x32xbf16>
    %7 = vector.shape_cast %6 : vector<1x32x32xbf16> to vector<32x32xbf16>
    %cst = arith.constant dense<0.000000e+00> : vector<16x32xf32>
    %8 = tpu.matmul %3, %7, %cst {dimension_numbers = #tpu.dot_dimension_numbers<[1], [0], [0], [1], [0, 0, 1, 1], [], []>} : vector<16x32xbf16>, vector<32x32xbf16>, vector<16x32xf32> -> vector<16x32xf32>
    %9 = arith.addf %5, %8 : vector<16x32xf32>
    %c0_8 = arith.constant 0 : index
    %c0_9 = arith.constant 0 : index
    %c0_10 = arith.constant 0 : index
    %10 = vector.load %arg9[%c0_8, %c0_9, %c0_10] : memref<3x16x32xf32, #tpu.memory_space<vmem>>, vector<1x16x32xf32>
    %11 = vector.shape_cast %10 : vector<1x16x32xf32> to vector<16x32xf32>
    %12 = vector.shape_cast %9 : vector<16x32xf32> to vector<1x16x32xf32>
    tpu.vector_store %arg9[%c0_8, %c0_9, %c0_10], %12 {strides = array<i32>} : memref<3x16x32xf32, #tpu.memory_space<vmem>>, vector<1x16x32xf32>,
    %c1 = arith.constant 1 : index
    %c0_11 = arith.constant 0 : index
    %c0_12 = arith.constant 0 : index
    %13 = vector.load %arg9[%c1, %c0_11, %c0_12] : memref<3x16x32xf32, #tpu.memory_space<vmem>>, vector<1x16x32xf32>
    %14 = vector.shape_cast %13 : vector<1x16x32xf32> to vector<16x32xf32>
    %c1_13 = arith.constant 1 : index
    %c0_14 = arith.constant 0 : index
    %c0_15 = arith.constant 0 : index
    %15 = vector.load %arg4[%c1_13, %c0_14, %c0_15] : memref<3x32x32xbf16, #tpu.memory_space<vmem>>, vector<1x32x32xbf16>
    %16 = vector.shape_cast %15 : vector<1x32x32xbf16> to vector<32x32xbf16>
    %cst_16 = arith.constant dense<0.000000e+00> : vector<16x32xf32>
    %17 = tpu.matmul %3, %16, %cst_16 {dimension_numbers = #tpu.dot_dimension_numbers<[1], [0], [0], [1], [0, 0, 1, 1], [], []>} : vector<16x32xbf16>, vector<32x32xbf16>, vector<16x32xf32> -> vector<16x32xf32>
    %18 = arith.addf %14, %17 : vector<16x32xf32>
    %c1_17 = arith.constant 1 : index
    %c0_18 = arith.constant 0 : index
    %c0_19 = arith.constant 0 : index
    %19 = vector.load %arg9[%c1_17, %c0_18, %c0_19] : memref<3x16x32xf32, #tpu.memory_space<vmem>>, vector<1x16x32xf32>
    %20 = vector.shape_cast %19 : vector<1x16x32xf32> to vector<16x32xf32>
    %21 = vector.shape_cast %18 : vector<16x32xf32> to vector<1x16x32xf32>
    tpu.vector_store %arg9[%c1_17, %c0_18, %c0_19], %21 {strides = array<i32>} : memref<3x16x32xf32, #tpu.memory_space<vmem>>, vector<1x16x32xf32>,
    %c2 = arith.constant 2 : index
    %c0_20 = arith.constant 0 : index
    %c0_21 = arith.constant 0 : index
    %22 = vector.load %arg9[%c2, %c0_20, %c0_21] : memref<3x16x32xf32, #tpu.memory_space<vmem>>, vector<1x16x32xf32>
    %23 = vector.shape_cast %22 : vector<1x16x32xf32> to vector<16x32xf32>
    %c2_22 = arith.constant 2 : index
    %c0_23 = arith.constant 0 : index
    %c0_24 = arith.constant 0 : index
    %24 = vector.load %arg4[%c2_22, %c0_23, %c0_24] : memref<3x32x32xbf16, #tpu.memory_space<vmem>>, vector<1x32x32xbf16>
    %25 = vector.shape_cast %24 : vector<1x32x32xbf16> to vector<32x32xbf16>
    %cst_25 = arith.constant dense<0.000000e+00> : vector<16x32xf32>
    %26 = tpu.matmul %3, %25, %cst_25 {dimension_numbers = #tpu.dot_dimension_numbers<[1], [0], [0], [1], [0, 0, 1, 1], [], []>} : vector<16x32xbf16>, vector<32x32xbf16>, vector<16x32xf32> -> vector<16x32xf32>
    %27 = arith.addf %23, %26 : vector<16x32xf32>
    %c2_26 = arith.constant 2 : index
    %c0_27 = arith.constant 0 : index
    %c0_28 = arith.constant 0 : index
    %28 = vector.load %arg9[%c2_26, %c0_27, %c0_28] : memref<3x16x32xf32, #tpu.memory_space<vmem>>, vector<1x16x32xf32>
    %29 = vector.shape_cast %28 : vector<1x16x32xf32> to vector<16x32xf32>
    %30 = vector.shape_cast %27 : vector<16x32xf32> to vector<1x16x32xf32>
    tpu.vector_store %arg9[%c2_26, %c0_27, %c0_28], %30 {strides = array<i32>} : memref<3x16x32xf32, #tpu.memory_space<vmem>>, vector<1x16x32xf32>,
    %c0_i32_29 = arith.constant 0 : i32
    %31 = arith.cmpi eq, %arg2, %c0_i32_29 : i32
    %32 = arith.extui %31 : i1 to i32
    %c0_i32_30 = arith.constant 0 : i32
    %33 = arith.cmpi ne, %32, %c0_i32_30 : i32
    scf.if %33 {
      %c0_31 = arith.constant 0 : index
      %c0_32 = arith.constant 0 : index
      %c0_33 = arith.constant 0 : index
      %34 = vector.load %arg9[%c0_31, %c0_32, %c0_33] : memref<3x16x32xf32, #tpu.memory_space<vmem>>, vector<1x16x32xf32>
      %35 = vector.shape_cast %34 : vector<1x16x32xf32> to vector<16x32xf32>
      %c0_34 = arith.constant 0 : index
      %c0_35 = arith.constant 0 : index
      %c0_36 = arith.constant 0 : index
      %36 = vector.load %arg5[%c0_34, %c0_35, %c0_36] : memref<3x1x32xf32, #tpu.memory_space<vmem>>, vector<1x1x32xf32>
      %37 = vector.shape_cast %36 : vector<1x1x32xf32> to vector<1x32xf32>
      %38 = vector.broadcast %37 : vector<1x32xf32> to vector<16x32xf32>
      %39 = arith.addf %35, %38 : vector<16x32xf32>
      %40 = arith.truncf %39 : vector<16x32xf32> to vector<16x32xbf16>
      %c0_37 = arith.constant 0 : index
      %c0_38 = arith.constant 0 : index
      %41 = vector.load %arg6[%c0_37, %c0_38] : memref<16x32xbf16, #tpu.memory_space<vmem>>, vector<16x32xbf16>
      tpu.vector_store %arg6[%c0_37, %c0_38], %40 {strides = array<i32>} : memref<16x32xbf16, #tpu.memory_space<vmem>>, vector<16x32xbf16>,
      %c1_39 = arith.constant 1 : index
      %c0_40 = arith.constant 0 : index
      %c0_41 = arith.constant 0 : index
      %42 = vector.load %arg9[%c1_39, %c0_40, %c0_41] : memref<3x16x32xf32, #tpu.memory_space<vmem>>, vector<1x16x32xf32>
      %43 = vector.shape_cast %42 : vector<1x16x32xf32> to vector<16x32xf32>
      %c1_42 = arith.constant 1 : index
      %c0_43 = arith.constant 0 : index
      %c0_44 = arith.constant 0 : index
      %44 = vector.load %arg5[%c1_42, %c0_43, %c0_44] : memref<3x1x32xf32, #tpu.memory_space<vmem>>, vector<1x1x32xf32>
      %45 = vector.shape_cast %44 : vector<1x1x32xf32> to vector<1x32xf32>
      %46 = vector.broadcast %45 : vector<1x32xf32> to vector<16x32xf32>
      %47 = arith.addf %43, %46 : vector<16x32xf32>
      %48 = arith.truncf %47 : vector<16x32xf32> to vector<16x32xbf16>
      %c0_45 = arith.constant 0 : index
      %c0_46 = arith.constant 0 : index
      %49 = vector.load %arg7[%c0_45, %c0_46] : memref<16x32xbf16, #tpu.memory_space<vmem>>, vector<16x32xbf16>
      tpu.vector_store %arg7[%c0_45, %c0_46], %48 {strides = array<i32>} : memref<16x32xbf16, #tpu.memory_space<vmem>>, vector<16x32xbf16>,
      %c2_47 = arith.constant 2 : index
      %c0_48 = arith.constant 0 : index
      %c0_49 = arith.constant 0 : index
      %50 = vector.load %arg9[%c2_47, %c0_48, %c0_49] : memref<3x16x32xf32, #tpu.memory_space<vmem>>, vector<1x16x32xf32>
      %51 = vector.shape_cast %50 : vector<1x16x32xf32> to vector<16x32xf32>
      %c2_50 = arith.constant 2 : index
      %c0_51 = arith.constant 0 : index
      %c0_52 = arith.constant 0 : index
      %52 = vector.load %arg5[%c2_50, %c0_51, %c0_52] : memref<3x1x32xf32, #tpu.memory_space<vmem>>, vector<1x1x32xf32>
      %53 = vector.shape_cast %52 : vector<1x1x32xf32> to vector<1x32xf32>
      %54 = vector.broadcast %53 : vector<1x32xf32> to vector<16x32xf32>
      %55 = arith.addf %51, %54 : vector<16x32xf32>
      %56 = arith.truncf %55 : vector<16x32xf32> to vector<16x32xbf16>
      %c0_53 = arith.constant 0 : index
      %c0_54 = arith.constant 0 : index
      %57 = vector.load %arg8[%c0_53, %c0_54] : memref<16x32xbf16, #tpu.memory_space<vmem>>, vector<16x32xbf16>
      tpu.vector_store %arg8[%c0_53, %c0_54], %56 {strides = array<i32>} : memref<16x32xbf16, #tpu.memory_space<vmem>>, vector<16x32xbf16>,
    } else {
    }
    return
  }
  func.func @transform_0(%arg0: i32, %arg1: i32, %arg2: i32) -> (i32, i32) {
    %c0_i32 = arith.constant 0 : i32
    return %arg0, %arg2 : i32, i32
  }
  func.func @transform_1(%arg0: i32, %arg1: i32, %arg2: i32) -> (i32, i32, i32) {
    %c0_i32 = arith.constant 0 : i32
    %c0_i32_0 = arith.constant 0 : i32
    return %c0_i32, %arg2, %arg1 : i32, i32, i32
  }
  func.func @transform_2(%arg0: i32, %arg1: i32, %arg2: i32) -> (i32, i32, i32) {
    %c0_i32 = arith.constant 0 : i32
    %c0_i32_0 = arith.constant 0 : i32
    %c0_i32_1 = arith.constant 0 : i32
    return %c0_i32, %c0_i32_0, %arg1 : i32, i32, i32
  }
  func.func @transform_3(%arg0: i32, %arg1: i32, %arg2: i32) -> (i32, i32) {
    %c0_i32 = arith.constant 0 : i32
    return %arg0, %arg1 : i32, i32
  }
  func.func @transform_4(%arg0: i32, %arg1: i32, %arg2: i32) -> (i32, i32) {
    %c0_i32 = arith.constant 0 : i32
    return %arg0, %arg1 : i32, i32
  }
  func.func @transform_5(%arg0: i32, %arg1: i32, %arg2: i32) -> (i32, i32) {
    %c0_i32 = arith.constant 0 : i32
    return %arg0, %arg1 : i32, i32
  }
}

module attributes {stable_mosaic.version = 11 : i64} {
  func.func @linear_kernel(%arg0: i32, %arg1: i32, %arg2: i32, %arg3: memref<16x32xbf16, #tpu.memory_space<vmem>>, %arg4: memref<32x32xbf16, #tpu.memory_space<vmem>>, %arg5: memref<1x32xf32, #tpu.memory_space<vmem>>, %arg6: memref<16x32xf32, #tpu.memory_space<vmem>>, %arg7: memref<16x32xf32, #tpu.memory_space<vmem>>) attributes {dimension_semantics = [#tpu.dimension_semantics<parallel>, #tpu.dimension_semantics<parallel>, #tpu.dimension_semantics<arbitrary>], iteration_bounds = array<i64: 1, 1, 1>, scalar_prefetch = 0 : i64, scratch_operands = 1 : i64, tpu.core_type = #tpu.core_type<tc>, window_params = [{transform_indices = @transform_0, window_bounds = array<i64: 16, 32>}, {transform_indices = @transform_1, window_bounds = array<i64: 32, 32>}, {transform_indices = @transform_2, window_bounds = array<i64: 1, 32>}, {transform_indices = @transform_3, window_bounds = array<i64: 16, 32>}]} {
    %c0_i32 = arith.constant 0 : i32
    %0 = arith.cmpi eq, %arg2, %c0_i32 : i32
    %1 = arith.extui %0 : i1 to i32
    %c0_i32_0 = arith.constant 0 : i32
    %2 = arith.cmpi ne, %1, %c0_i32_0 : i32
    scf.if %2 {
      %cst_10 = arith.constant 0.000000e+00 : f32
      %12 = vector.broadcast %cst_10 : f32 to vector<16x32xf32>
      %c0_11 = arith.constant 0 : index
      %c0_12 = arith.constant 0 : index
      %13 = vector.load %arg7[%c0_11, %c0_12] : memref<16x32xf32, #tpu.memory_space<vmem>>, vector<16x32xf32>
      tpu.vector_store %arg7[%c0_11, %c0_12], %12 {strides = array<i32>} : memref<16x32xf32, #tpu.memory_space<vmem>>, vector<16x32xf32>,
    } else {
    }
    %c0 = arith.constant 0 : index
    %c0_1 = arith.constant 0 : index
    %3 = vector.load %arg7[%c0, %c0_1] : memref<16x32xf32, #tpu.memory_space<vmem>>, vector<16x32xf32>
    %c0_2 = arith.constant 0 : index
    %c0_3 = arith.constant 0 : index
    %4 = vector.load %arg3[%c0_2, %c0_3] : memref<16x32xbf16, #tpu.memory_space<vmem>>, vector<16x32xbf16>
    %c0_4 = arith.constant 0 : index
    %c0_5 = arith.constant 0 : index
    %5 = vector.load %arg4[%c0_4, %c0_5] : memref<32x32xbf16, #tpu.memory_space<vmem>>, vector<32x32xbf16>
    %cst = arith.constant dense<0.000000e+00> : vector<16x32xf32>
    %6 = tpu.matmul %4, %5, %cst {dimension_numbers = #tpu.dot_dimension_numbers<[1], [0], [0], [1], [0, 0, 1, 1], [], []>} : vector<16x32xbf16>, vector<32x32xbf16>, vector<16x32xf32> -> vector<16x32xf32>
    %7 = arith.addf %3, %6 : vector<16x32xf32>
    %c0_6 = arith.constant 0 : index
    %c0_7 = arith.constant 0 : index
    %8 = vector.load %arg7[%c0_6, %c0_7] : memref<16x32xf32, #tpu.memory_space<vmem>>, vector<16x32xf32>
    tpu.vector_store %arg7[%c0_6, %c0_7], %7 {strides = array<i32>} : memref<16x32xf32, #tpu.memory_space<vmem>>, vector<16x32xf32>,
    %c0_i32_8 = arith.constant 0 : i32
    %9 = arith.cmpi eq, %arg2, %c0_i32_8 : i32
    %10 = arith.extui %9 : i1 to i32
    %c0_i32_9 = arith.constant 0 : i32
    %11 = arith.cmpi ne, %10, %c0_i32_9 : i32
    scf.if %11 {
      %c0_10 = arith.constant 0 : index
      %c0_11 = arith.constant 0 : index
      %12 = vector.load %arg7[%c0_10, %c0_11] : memref<16x32xf32, #tpu.memory_space<vmem>>, vector<16x32xf32>
      %c0_12 = arith.constant 0 : index
      %c0_13 = arith.constant 0 : index
      %13 = vector.load %arg5[%c0_12, %c0_13] : memref<1x32xf32, #tpu.memory_space<vmem>>, vector<1x32xf32>
      %14 = vector.broadcast %13 : vector<1x32xf32> to vector<16x32xf32>
      %15 = arith.addf %12, %14 : vector<16x32xf32>
      %c0_14 = arith.constant 0 : index
      %c0_15 = arith.constant 0 : index
      %16 = vector.load %arg6[%c0_14, %c0_15] : memref<16x32xf32, #tpu.memory_space<vmem>>, vector<16x32xf32>
      tpu.vector_store %arg6[%c0_14, %c0_15], %15 {strides = array<i32>} : memref<16x32xf32, #tpu.memory_space<vmem>>, vector<16x32xf32>,
    } else {
    }
    return
  }
  func.func @transform_0(%arg0: i32, %arg1: i32, %arg2: i32) -> (i32, i32) {
    %c0_i32 = arith.constant 0 : i32
    return %arg0, %arg2 : i32, i32
  }
  func.func @transform_1(%arg0: i32, %arg1: i32, %arg2: i32) -> (i32, i32) {
    %c0_i32 = arith.constant 0 : i32
    return %arg2, %arg1 : i32, i32
  }
  func.func @transform_2(%arg0: i32, %arg1: i32, %arg2: i32) -> (i32, i32) {
    %c0_i32 = arith.constant 0 : i32
    %c0_i32_0 = arith.constant 0 : i32
    return %c0_i32, %arg1 : i32, i32
  }
  func.func @transform_3(%arg0: i32, %arg1: i32, %arg2: i32) -> (i32, i32) {
    %c0_i32 = arith.constant 0 : i32
    return %arg0, %arg1 : i32, i32
  }
}

</mosaic_0001>

<llo_original>
// kernel: multi_head_attention.5
$region0: #{multi_head_attention.5}
  #allocation0 [shape = 'u32[]', space=smem, size = 0x4, offset = 0x4, fixed_abs, tag = 'smem constant byte address 0x4 - core index']
  #allocation1 [shape = 'u32[144,128]{1,0:T(1,128)}', space=vmem, size = 0x12000, scoped, tag = 'internal scratch']
  #allocation2 [shape = 'f32[16,32]{1,0:T(8,128)}', space=vmem, size = 0x2000, scoped, tag = 'scratch operand']
  %s0 = inlined_call_operand.hbm [shape: bf16[16,32], index: 0, kind: input, shape index: {}]
  %s1 = inlined_call_operand.hbm [shape: bf16[32,32], index: 1, kind: input, shape index: {}]
  %s2 = inlined_call_operand.hbm [shape: f32[1,32], index: 2, kind: input, shape index: {}]
  %s3 = inlined_call_operand.hbm [shape: f32[16,32], index: 3, kind: output, shape index: {}]
  %s4 = sld [smem:[#allocation0]]
  $region42: #{multi_head_attention.5} parent=0
    _
  %s6 = ssub.s32 1, %s4
  %s7 = scalar_select 0, %s6, %s4
  $region1: #{multi_head_attention.5} parent=0
    #allocation3 [shape = 'u8[4096]{0}', space=vmem, size = 0x1000, scoped, tag = 'input window, operand 0, single buffered']
    #allocation4 [shape = 's32[1]{0}', space=sflag, size = 0x4, scoped, tag = 'scoped memory for multi_head_attention.5']
    #allocation5 [shape = 's32[1]{0}', space=sflag, size = 0x4, scoped, tag = 'scoped memory for multi_head_attention.5']
    #allocation6 [shape = 'u8[8192]{0}', space=vmem, size = 0x2000, scoped, tag = 'input window, operand 1, single buffered']
    #allocation7 [shape = 's32[1]{0}', space=sflag, size = 0x4, scoped, tag = 'scoped memory for multi_head_attention.5']
    #allocation8 [shape = 'u8[512]{0}', space=vmem, size = 0x400, scoped, tag = 'input window, operand 2, single buffered']
    #allocation9 [shape = 'u8[8192]{0}', space=vmem, size = 0x2000, scoped, tag = 'output window, operand 0, single buffered']
    %8 = vsyncpa [#allocation4], 0
    %9 = vsyncpa [#allocation7], 0
    %10 = vsyncpa [#allocation5], 0
    // Predicated region
    $region2: #{multi_head_attention.5} parent=1 // pred_check
      _
    $region3: #{multi_head_attention.5} parent=1 // pred_check_branch
      %12 = sbr.rel (0) target = $region5
    $region4: #{multi_head_attention.5} parent=1 // pred_region
      %s14 = ssub.s32 128, 128
      %15 = vsyncadd [#allocation4], %s14
      %s16 = sshll.u32 [#allocation3], 4
      %s17 = int_to_ptr.vmem [resolvable:$true] %s16
      %22 = dma.hbm_to_vmem [thread:$0]  %s0, 128, %s17, [#allocation4], 64, 64, 4
    $region5: #{multi_head_attention.5} parent=1 // pred_fallthru
      _
    // Predicated region
    $region6: #{multi_head_attention.5} parent=1 // pred_check
      _
    $region7: #{multi_head_attention.5} parent=1 // pred_check_branch
      %24 = sbr.rel (0) target = $region9
    $region8: #{multi_head_attention.5} parent=1 // pred_region
      %s26 = ssub.s32 256, 256
      %27 = vsyncadd [#allocation7], %s26
      %s28 = sshll.u32 [#allocation6], 4
      %s29 = int_to_ptr.vmem [resolvable:$true] %s28
      %34 = dma.hbm_to_vmem [thread:$0]  %s1, 256, %s29, [#allocation7], 64, 64, 4
    $region9: #{multi_head_attention.5} parent=1 // pred_fallthru
      _
    // Predicated region
    $region10: #{multi_head_attention.5} parent=1 // pred_check
      _
    $region11: #{multi_head_attention.5} parent=1 // pred_check_branch
      %36 = sbr.rel (0) target = $region13
    $region12: #{multi_head_attention.5} parent=1 // pred_region
      %s38 = ssub.s32 16, 16
      %39 = vsyncadd [#allocation7], %s38
      %s41 = sshll.u32 [#allocation8], 4
      %s42 = int_to_ptr.vmem [resolvable:$true] %s41
      %44 = dma.hbm_to_vmem [thread:$0]  %s2, 16, %s42, [#allocation7]
    $region13: #{multi_head_attention.5} parent=1 // pred_fallthru
      _
    // Predicated region
    $region14: #{multi_head_attention.5} parent=1 // pred_check
      _
    $region15: #{multi_head_attention.5} parent=1 // pred_check_branch
      %46 = sbr.rel (0) target = $region17
    $region16: #{multi_head_attention.5} parent=1 // pred_region
      %47 = dma.done [#allocation4], 128
    $region17: #{multi_head_attention.5} parent=1 // pred_fallthru
      _
    // Predicated region
    $region18: #{multi_head_attention.5} parent=1 // pred_check
      _
    $region19: #{multi_head_attention.5} parent=1 // pred_check_branch
      %49 = sbr.rel (0) target = $region21
    $region20: #{multi_head_attention.5} parent=1 // pred_region
      %50 = dma.done [#allocation7], 256
    $region21: #{multi_head_attention.5} parent=1 // pred_fallthru
      _
    // Predicated region
    $region22: #{multi_head_attention.5} parent=1 // pred_check
      _
    $region23: #{multi_head_attention.5} parent=1 // pred_check_branch
      %52 = sbr.rel (0) target = $region25
    $region24: #{multi_head_attention.5} parent=1 // pred_region
      %53 = dma.done [#allocation7], 16
    $region25: #{multi_head_attention.5} parent=1 // pred_fallthru
      _
    %p55 = scmp.eq.s32.totalorder 0, 0
    // Predicated region
    $region26: #{multi_head_attention.5} parent=1 // pred_check
      %p56 = pneg %p55
    $region27: #{multi_head_attention.5} parent=1 // pred_check_branch
      %58 = sbr.rel (%p56) target = $region29
    $region28: #{multi_head_attention.5} parent=1 // pred_region
      %vm59 = vcmask 261120
      %60 = vst.msk [vmem:[#allocation2] sm:$0xff] %vm59, 0.0
      %61 = vst.msk [vmem:[#allocation2 + $0x8] sm:$0xff] %vm59, 0.0
    $region29: #{multi_head_attention.5} parent=1 // pred_fallthru
      _
    %v62 = vld [vmem:[#allocation2] sm:$0xff]
    %v63 = vld [vmem:[#allocation2 + $0x8] sm:$0xff]
    %v64 = vld [vmem:[#allocation3] sm:$0xf]
    %v65 = vld [vmem:[#allocation3 + $0x4] sm:$0xf]
    %v66 = vld [vmem:[#allocation6] sm:$0xf]
    %v67 = vld [vmem:[#allocation6 + $0x4] sm:$0xf]
    %v68 = vld [vmem:[#allocation6 + $0x8] sm:$0xf]
    %v69 = vld [vmem:[#allocation6 + $0xc] sm:$0xf]
    %v72 = vunpack.c.l.b16 %v64
    %v73 = vunpack.c.l.b16 %v65
    %v74 = vpack.c.b16 %v73, %v72
    %v79 = vunpack.c.l.b16 %v66
    %v80 = vunpack.c.l.b16 %v67
    %v81 = vunpack.c.l.b16 %v68
    %v82 = vunpack.c.l.b16 %v69
    %v83 = vpack.c.b16 %v80, %v79
    %v84 = vpack.c.b16 %v82, %v81
    %vm87 = vcmask 261120
    %v89 = vsel %vm87, %v74, 0
    %91 = vmatprep.subr.bf16.mxu0 0
    %92 = vmatpush1.bf16.msra.mxu0 %v83
    %93 = vmatprep.subr.bf16.mxu0 0
    %94 = vmatpush1.bf16.msra.mxu0 %v84
    %95 = vmatprep.subr.bf16.mxu0 0
    %96 = vmatpush1.bf16.msra.mxu0 0
    %97 = vmatprep.subr.bf16.mxu0 0
    %98 = vmatpush1.bf16.msra.mxu0 0
    %99 = vmatprep.subr.bf16.mxu0 0
    %100 = vmatpush1.bf16.msra.mxu0 0
    %101 = vmatprep.subr.bf16.mxu0 0
    %102 = vmatpush1.bf16.msra.mxu0 0
    %103 = vmatprep.subr.bf16.mxu0 0
    %104 = vmatpush1.bf16.msra.mxu0 0
    %105 = vmatprep.subr.bf16.mxu0 0
    %106 = vmatpush1.bf16.msra.mxu0 0
    %107 = vmatprep.subr.bf16.mxu0 0
    %108 = vmatpush1.bf16.msra.mxu0 0
    %109 = vmatprep.subr.bf16.mxu0 0
    %110 = vmatpush1.bf16.msra.mxu0 0
    %111 = vmatprep.subr.bf16.mxu0 0
    %112 = vmatpush1.bf16.msra.mxu0 0
    %113 = vmatprep.subr.bf16.mxu0 0
    %114 = vmatpush1.bf16.msra.mxu0 0
    %115 = vmatprep.subr.bf16.mxu0 0
    %116 = vmatpush1.bf16.msra.mxu0 0
    %117 = vmatprep.subr.bf16.mxu0 0
    %118 = vmatpush1.bf16.msra.mxu0 0
    %119 = vmatprep.subr.bf16.mxu0 0
    %120 = vmatpush1.bf16.msra.mxu0 0
    %121 = vmatprep.subr.bf16.mxu0 0
    %122 = vmatpush1.bf16.msra.mxu0 0
    %123 = vmatprep.mubr.bf16.mxu0 0
    %124 = vmatmul.mubr.bf16.gmra.mrb[0].mxu0 %v89
    %v125 = vpop.f32.mrb[0].mxu0
    %v126 = vadd.f32 0.0, %v125
    %v127 = vpop.f32.mrb[0].mxu0
    %v128 = vpop.f32.mrb[0].mxu0
    %v129 = vadd.f32 0.0, %v128
    %v130 = vpop.f32.mrb[0].mxu0
    %131 = vdwg.mxu0
    %v132 = vadd.f32 %v62, %v126
    %v133 = vadd.f32 %v63, %v129
    %134 = vst.msk [vmem:[#allocation2] sm:$0xff] %vm87, %v132
    %135 = vst.msk [vmem:[#allocation2 + $0x8] sm:$0xff] %vm87, %v133
    // Predicated region
    $region30: #{multi_head_attention.5} parent=1 // pred_check
      %p136 = pneg %p55
    $region31: #{multi_head_attention.5} parent=1 // pred_check_branch
      %138 = sbr.rel (%p136) target = $region33
    $region32: #{multi_head_attention.5} parent=1 // pred_region
      %v139 = vld [vmem:[#allocation2] sm:$0xff]
      %v140 = vld [vmem:[#allocation2 + $0x8] sm:$0xff]
      %v141 = vld [vmem:[#allocation8] sm:$0x1]
      %v143 = vlaneseq
      %v144 = vshrl.u32 %v143, 7
      %v145 = vsub.s32 0, %v144
      %v146 = vrot.slane %v141, %v145
      %v148 = vadd.f32 %v139, %v146
      %v149 = vadd.f32 %v140, %v146
      %150 = vst.msk [vmem:[#allocation9] sm:$0xff] %vm87, %v148
      %151 = vst.msk [vmem:[#allocation9 + $0x8] sm:$0xff] %vm87, %v149
    $region33: #{multi_head_attention.5} parent=1 // pred_fallthru
      _
    // Predicated region
    $region34: #{multi_head_attention.5} parent=1 // pred_check
      _
    $region35: #{multi_head_attention.5} parent=1 // pred_check_branch
      %153 = sbr.rel (0) target = $region37
    $region36: #{multi_head_attention.5} parent=1 // pred_region
      %s155 = ssub.s32 256, 256
      %156 = vsyncadd [#allocation5], %s155
      %s157 = sshll.u32 [#allocation9], 4
      %s158 = int_to_ptr.vmem [resolvable:$true] %s157
      %163 = dma.vmem_to_hbm [thread:$0]  %s158, 256, %s3, [#allocation5], 128, 128, 8
    $region37: #{multi_head_attention.5} parent=1 // pred_fallthru
      _
    // Predicated region
    $region38: #{multi_head_attention.5} parent=1 // pred_check
      _
    $region39: #{multi_head_attention.5} parent=1 // pred_check_branch
      %165 = sbr.rel (0) target = $region41
    $region40: #{multi_head_attention.5} parent=1 // pred_region
      %166 = dma.done [#allocation5], 256
    $region41: #{multi_head_attention.5} parent=1 // pred_fallthru
      _
    %167 = vsyncpa [#allocation4], 1
    %168 = vsyncpa [#allocation7], 1
    %169 = vsyncpa [#allocation5], 1

// kernel: multi_head_attention.3
$region0: #{multi_head_attention.3}
  #allocation0 [shape = 'u32[]', space=smem, size = 0x4, offset = 0x4, fixed_abs, tag = 'smem constant byte address 0x4 - core index']
  #allocation1 [shape = 'u32[144,128]{1,0:T(1,128)}', space=vmem, size = 0x12000, scoped, tag = 'internal scratch']
  #allocation2 [shape = 'f32[3,16,32]{2,1,0:T(8,128)}', space=vmem, size = 0x6000, scoped, tag = 'scratch operand']
  %s0 = inlined_call_operand.hbm [shape: bf16[16,32], index: 0, kind: input, shape index: {}]
  %s1 = inlined_call_operand.hbm [shape: bf16[3,32,32], index: 1, kind: input, shape index: {}]
  %s2 = inlined_call_operand.hbm [shape: f32[3,1,32], index: 2, kind: input, shape index: {}]
  %s3 = inlined_call_operand.hbm [shape: bf16[16,32], index: 3, kind: output, shape index: {0}]
  %s4 = inlined_call_operand.hbm [shape: bf16[16,32], index: 4, kind: output, shape index: {1}]
  %s5 = inlined_call_operand.hbm [shape: bf16[16,32], index: 5, kind: output, shape index: {2}]
  %6 = xla_tuple %s3, %s4, %s5
  %s7 = sld [smem:[#allocation0]]
  $region58: #{multi_head_attention.3} parent=0
    _
  %s9 = ssub.s32 1, %s7
  %s10 = scalar_select 0, %s9, %s7
  $region1: #{multi_head_attention.3} parent=0
    #allocation3 [shape = 'u8[4096]{0}', space=vmem, size = 0x1000, scoped, tag = 'input window, operand 0, single buffered']
    #allocation4 [shape = 's32[1]{0}', space=sflag, size = 0x4, scoped, tag = 'scoped memory for multi_head_attention.3']
    #allocation5 [shape = 's32[1]{0}', space=sflag, size = 0x4, scoped, tag = 'scoped memory for multi_head_attention.3']
    #allocation6 [shape = 'u8[24576]{0}', space=vmem, size = 0x6000, scoped, tag = 'input window, operand 1, single buffered']
    #allocation7 [shape = 's32[1]{0}', space=sflag, size = 0x4, scoped, tag = 'scoped memory for multi_head_attention.3']
    #allocation8 [shape = 'u8[1536]{0}', space=vmem, size = 0x800, scoped, tag = 'input window, operand 2, single buffered']
    #allocation9 [shape = 'u8[4096]{0}', space=vmem, size = 0x1000, scoped, tag = 'output window, operand 0, single buffered']
    #allocation10 [shape = 'u8[4096]{0}', space=vmem, size = 0x1000, scoped, tag = 'output window, operand 1, single buffered']
    #allocation11 [shape = 's32[1]{0}', space=sflag, size = 0x4, scoped, tag = 'scoped memory for multi_head_attention.3']
    #allocation12 [shape = 'u8[4096]{0}', space=vmem, size = 0x1000, scoped, tag = 'output window, operand 2, single buffered']
    %11 = vsyncpa [#allocation4], 0
    %12 = vsyncpa [#allocation7], 0
    %13 = vsyncpa [#allocation5], 0
    %14 = vsyncpa [#allocation11], 0
    // Predicated region
    $region2: #{multi_head_attention.3} parent=1 // pred_check
      _
    $region3: #{multi_head_attention.3} parent=1 // pred_check_branch
      %16 = sbr.rel (0) target = $region5
    $region4: #{multi_head_attention.3} parent=1 // pred_region
      %s18 = ssub.s32 128, 128
      %19 = vsyncadd [#allocation4], %s18
      %s20 = sshll.u32 [#allocation3], 4
      %s21 = int_to_ptr.vmem [resolvable:$true] %s20
      %26 = dma.hbm_to_vmem [thread:$0]  %s0, 128, %s21, [#allocation4], 64, 64, 4
    $region5: #{multi_head_attention.3} parent=1 // pred_fallthru
      _
    // Predicated region
    $region6: #{multi_head_attention.3} parent=1 // pred_check
      _
    $region7: #{multi_head_attention.3} parent=1 // pred_check_branch
      %28 = sbr.rel (0) target = $region9
    $region8: #{multi_head_attention.3} parent=1 // pred_region
      %s30 = ssub.s32 768, 768
      %31 = vsyncadd [#allocation7], %s30
      %s32 = sshll.u32 [#allocation6], 4
      %s33 = int_to_ptr.vmem [resolvable:$true] %s32
      %38 = dma.hbm_to_vmem [thread:$0]  %s1, 768, %s33, [#allocation7], 64, 64, 4
    $region9: #{multi_head_attention.3} parent=1 // pred_fallthru
      _
    // Predicated region
    $region10: #{multi_head_attention.3} parent=1 // pred_check
      _
    $region11: #{multi_head_attention.3} parent=1 // pred_check_branch
      %40 = sbr.rel (0) target = $region13
    $region12: #{multi_head_attention.3} parent=1 // pred_region
      %s42 = ssub.s32 48, 48
      %43 = vsyncadd [#allocation7], %s42
      %s44 = sshll.u32 [#allocation8], 4
      %s45 = int_to_ptr.vmem [resolvable:$true] %s44
      %50 = dma.hbm_to_vmem [thread:$0]  %s2, 48, %s45, [#allocation7], 16, 16, 1
    $region13: #{multi_head_attention.3} parent=1 // pred_fallthru
      _
    // Predicated region
    $region14: #{multi_head_attention.3} parent=1 // pred_check
      _
    $region15: #{multi_head_attention.3} parent=1 // pred_check_branch
      %52 = sbr.rel (0) target = $region17
    $region16: #{multi_head_attention.3} parent=1 // pred_region
      %53 = dma.done [#allocation4], 128
    $region17: #{multi_head_attention.3} parent=1 // pred_fallthru
      _
    // Predicated region
    $region18: #{multi_head_attention.3} parent=1 // pred_check
      _
    $region19: #{multi_head_attention.3} parent=1 // pred_check_branch
      %55 = sbr.rel (0) target = $region21
    $region20: #{multi_head_attention.3} parent=1 // pred_region
      %56 = dma.done [#allocation7], 768
    $region21: #{multi_head_attention.3} parent=1 // pred_fallthru
      _
    // Predicated region
    $region22: #{multi_head_attention.3} parent=1 // pred_check
      _
    $region23: #{multi_head_attention.3} parent=1 // pred_check_branch
      %58 = sbr.rel (0) target = $region25
    $region24: #{multi_head_attention.3} parent=1 // pred_region
      %59 = dma.done [#allocation7], 48
    $region25: #{multi_head_attention.3} parent=1 // pred_fallthru
      _
    %p61 = scmp.eq.s32.totalorder 0, 0
    // Predicated region
    $region26: #{multi_head_attention.3} parent=1 // pred_check
      %p62 = pneg %p61
    $region27: #{multi_head_attention.3} parent=1 // pred_check_branch
      %64 = sbr.rel (%p62) target = $region29
    $region28: #{multi_head_attention.3} parent=1 // pred_region
      %vm65 = vcmask 261120
      %66 = vst.msk [vmem:[#allocation2] sm:$0xff] %vm65, 0.0
      %67 = vst.msk [vmem:[#allocation2 + $0x8] sm:$0xff] %vm65, 0.0
      %68 = vst.msk [vmem:[#allocation2 + $0x10] sm:$0xff] %vm65, 0.0
      %69 = vst.msk [vmem:[#allocation2 + $0x18] sm:$0xff] %vm65, 0.0
      %70 = vst.msk [vmem:[#allocation2 + $0x20] sm:$0xff] %vm65, 0.0
      %71 = vst.msk [vmem:[#allocation2 + $0x28] sm:$0xff] %vm65, 0.0
    $region29: #{multi_head_attention.3} parent=1 // pred_fallthru
      _
    %v72 = vld [vmem:[#allocation3] sm:$0xf]
    %v73 = vld [vmem:[#allocation3 + $0x4] sm:$0xf]
    %v74 = vld [vmem:[#allocation2] sm:$0xff]
    %v75 = vld [vmem:[#allocation2 + $0x8] sm:$0xff]
    %v76 = vld [vmem:[#allocation6] sm:$0xf]
    %v77 = vld [vmem:[#allocation6 + $0x4] sm:$0xf]
    %v78 = vld [vmem:[#allocation6 + $0x8] sm:$0xf]
    %v79 = vld [vmem:[#allocation6 + $0xc] sm:$0xf]
    %v82 = vunpack.c.l.b16 %v72
    %v83 = vunpack.c.l.b16 %v73
    %v84 = vpack.c.b16 %v83, %v82
    %v89 = vunpack.c.l.b16 %v76
    %v90 = vunpack.c.l.b16 %v77
    %v91 = vunpack.c.l.b16 %v78
    %v92 = vunpack.c.l.b16 %v79
    %v93 = vpack.c.b16 %v90, %v89
    %v94 = vpack.c.b16 %v92, %v91
    %vm97 = vcmask 261120
    %v99 = vsel %vm97, %v84, 0
    %101 = vmatprep.subr.bf16.mxu0 0
    %102 = vmatpush1.bf16.msra.mxu0 %v93
    %103 = vmatprep.subr.bf16.mxu0 0
    %104 = vmatpush1.bf16.msra.mxu0 %v94
    %105 = vmatprep.subr.bf16.mxu0 0
    %106 = vmatpush1.bf16.msra.mxu0 0
    %107 = vmatprep.subr.bf16.mxu0 0
    %108 = vmatpush1.bf16.msra.mxu0 0
    %109 = vmatprep.subr.bf16.mxu0 0
    %110 = vmatpush1.bf16.msra.mxu0 0
    %111 = vmatprep.subr.bf16.mxu0 0
    %112 = vmatpush1.bf16.msra.mxu0 0
    %113 = vmatprep.subr.bf16.mxu0 0
    %114 = vmatpush1.bf16.msra.mxu0 0
    %115 = vmatprep.subr.bf16.mxu0 0
    %116 = vmatpush1.bf16.msra.mxu0 0
    %117 = vmatprep.subr.bf16.mxu0 0
    %118 = vmatpush1.bf16.msra.mxu0 0
    %119 = vmatprep.subr.bf16.mxu0 0
    %120 = vmatpush1.bf16.msra.mxu0 0
    %121 = vmatprep.subr.bf16.mxu0 0
    %122 = vmatpush1.bf16.msra.mxu0 0
    %123 = vmatprep.subr.bf16.mxu0 0
    %124 = vmatpush1.bf16.msra.mxu0 0
    %125 = vmatprep.subr.bf16.mxu0 0
    %126 = vmatpush1.bf16.msra.mxu0 0
    %127 = vmatprep.subr.bf16.mxu0 0
    %128 = vmatpush1.bf16.msra.mxu0 0
    %129 = vmatprep.subr.bf16.mxu0 0
    %130 = vmatpush1.bf16.msra.mxu0 0
    %131 = vmatprep.subr.bf16.mxu0 0
    %132 = vmatpush1.bf16.msra.mxu0 0
    %133 = vmatprep.mubr.bf16.mxu0 0
    %134 = vmatmul.mubr.bf16.gmra.mrb[0].mxu0 %v99
    %v135 = vpop.f32.mrb[0].mxu0
    %v136 = vadd.f32 0.0, %v135
    %v137 = vpop.f32.mrb[0].mxu0
    %v138 = vpop.f32.mrb[0].mxu0
    %v139 = vadd.f32 0.0, %v138
    %v140 = vpop.f32.mrb[0].mxu0
    %141 = vdwg.mxu0
    %v142 = vadd.f32 %v74, %v136
    %v143 = vadd.f32 %v75, %v139
    %144 = vst.msk [vmem:[#allocation2] sm:$0xff] %vm97, %v142
    %145 = vst.msk [vmem:[#allocation2 + $0x8] sm:$0xff] %vm97, %v143
    %s146 = scalar_lea.vmem [#allocation2], 16
    %v147 = vld [vmem:[%s146] sm:$0xff]
    %v148 = vld [vmem:[%s146 + $0x8] sm:$0xff]
    %s149 = scalar_lea.vmem [#allocation6], 16
    %v150 = vld [vmem:[%s149] sm:$0xf]
    %v151 = vld [vmem:[%s149 + $0x4] sm:$0xf]
    %v152 = vld [vmem:[%s149 + $0x8] sm:$0xf]
    %v153 = vld [vmem:[%s149 + $0xc] sm:$0xf]
    %v158 = vunpack.c.l.b16 %v150
    %v159 = vunpack.c.l.b16 %v151
    %v160 = vunpack.c.l.b16 %v152
    %v161 = vunpack.c.l.b16 %v153
    %v162 = vpack.c.b16 %v159, %v158
    %v163 = vpack.c.b16 %v161, %v160
    %166 = vmatprep.subr.bf16.mxu0 0
    %167 = vmatpush1.bf16.msra.mxu0 %v162
    %168 = vmatprep.subr.bf16.mxu0 0
    %169 = vmatpush1.bf16.msra.mxu0 %v163
    %170 = vmatprep.subr.bf16.mxu0 0
    %171 = vmatpush1.bf16.msra.mxu0 0
    %172 = vmatprep.subr.bf16.mxu0 0
    %173 = vmatpush1.bf16.msra.mxu0 0
    %174 = vmatprep.subr.bf16.mxu0 0
    %175 = vmatpush1.bf16.msra.mxu0 0
    %176 = vmatprep.subr.bf16.mxu0 0
    %177 = vmatpush1.bf16.msra.mxu0 0
    %178 = vmatprep.subr.bf16.mxu0 0
    %179 = vmatpush1.bf16.msra.mxu0 0
    %180 = vmatprep.subr.bf16.mxu0 0
    %181 = vmatpush1.bf16.msra.mxu0 0
    %182 = vmatprep.subr.bf16.mxu0 0
    %183 = vmatpush1.bf16.msra.mxu0 0
    %184 = vmatprep.subr.bf16.mxu0 0
    %185 = vmatpush1.bf16.msra.mxu0 0
    %186 = vmatprep.subr.bf16.mxu0 0
    %187 = vmatpush1.bf16.msra.mxu0 0
    %188 = vmatprep.subr.bf16.mxu0 0
    %189 = vmatpush1.bf16.msra.mxu0 0
    %190 = vmatprep.subr.bf16.mxu0 0
    %191 = vmatpush1.bf16.msra.mxu0 0
    %192 = vmatprep.subr.bf16.mxu0 0
    %193 = vmatpush1.bf16.msra.mxu0 0
    %194 = vmatprep.subr.bf16.mxu0 0
    %195 = vmatpush1.bf16.msra.mxu0 0
    %196 = vmatprep.subr.bf16.mxu0 0
    %197 = vmatpush1.bf16.msra.mxu0 0
    %198 = vmatprep.mubr.bf16.mxu0 0
    %199 = vmatmul.mubr.bf16.gmra.mrb[0].mxu0 %v99
    %v200 = vpop.f32.mrb[0].mxu0
    %v201 = vadd.f32 0.0, %v200
    %v202 = vpop.f32.mrb[0].mxu0
    %v203 = vpop.f32.mrb[0].mxu0
    %v204 = vadd.f32 0.0, %v203
    %v205 = vpop.f32.mrb[0].mxu0
    %206 = vdwg.mxu0
    %v207 = vadd.f32 %v147, %v201
    %v208 = vadd.f32 %v148, %v204
    %209 = vst.msk [vmem:[%s146] sm:$0xff] %vm97, %v207
    %210 = vst.msk [vmem:[%s146 + $0x8] sm:$0xff] %vm97, %v208
    %s211 = scalar_lea.vmem [#allocation2], 32
    %v212 = vld [vmem:[%s211] sm:$0xff]
    %v213 = vld [vmem:[%s211 + $0x8] sm:$0xff]
    %s214 = scalar_lea.vmem [#allocation6], 32
    %v215 = vld [vmem:[%s214] sm:$0xf]
    %v216 = vld [vmem:[%s214 + $0x4] sm:$0xf]
    %v217 = vld [vmem:[%s214 + $0x8] sm:$0xf]
    %v218 = vld [vmem:[%s214 + $0xc] sm:$0xf]
    %v223 = vunpack.c.l.b16 %v215
    %v224 = vunpack.c.l.b16 %v216
    %v225 = vunpack.c.l.b16 %v217
    %v226 = vunpack.c.l.b16 %v218
    %v227 = vpack.c.b16 %v224, %v223
    %v228 = vpack.c.b16 %v226, %v225
    %231 = vmatprep.subr.bf16.mxu0 0
    %232 = vmatpush1.bf16.msra.mxu0 %v227
    %233 = vmatprep.subr.bf16.mxu0 0
    %234 = vmatpush1.bf16.msra.mxu0 %v228
    %235 = vmatprep.subr.bf16.mxu0 0
    %236 = vmatpush1.bf16.msra.mxu0 0
    %237 = vmatprep.subr.bf16.mxu0 0
    %238 = vmatpush1.bf16.msra.mxu0 0
    %239 = vmatprep.subr.bf16.mxu0 0
    %240 = vmatpush1.bf16.msra.mxu0 0
    %241 = vmatprep.subr.bf16.mxu0 0
    %242 = vmatpush1.bf16.msra.mxu0 0
    %243 = vmatprep.subr.bf16.mxu0 0
    %244 = vmatpush1.bf16.msra.mxu0 0
    %245 = vmatprep.subr.bf16.mxu0 0
    %246 = vmatpush1.bf16.msra.mxu0 0
    %247 = vmatprep.subr.bf16.mxu0 0
    %248 = vmatpush1.bf16.msra.mxu0 0
    %249 = vmatprep.subr.bf16.mxu0 0
    %250 = vmatpush1.bf16.msra.mxu0 0
    %251 = vmatprep.subr.bf16.mxu0 0
    %252 = vmatpush1.bf16.msra.mxu0 0
    %253 = vmatprep.subr.bf16.mxu0 0
    %254 = vmatpush1.bf16.msra.mxu0 0
    %255 = vmatprep.subr.bf16.mxu0 0
    %256 = vmatpush1.bf16.msra.mxu0 0
    %257 = vmatprep.subr.bf16.mxu0 0
    %258 = vmatpush1.bf16.msra.mxu0 0
    %259 = vmatprep.subr.bf16.mxu0 0
    %260 = vmatpush1.bf16.msra.mxu0 0
    %261 = vmatprep.subr.bf16.mxu0 0
    %262 = vmatpush1.bf16.msra.mxu0 0
    %263 = vmatprep.mubr.bf16.mxu0 0
    %264 = vmatmul.mubr.bf16.gmra.mrb[0].mxu0 %v99
    %v265 = vpop.f32.mrb[0].mxu0
    %v266 = vadd.f32 0.0, %v265
    %v267 = vpop.f32.mrb[0].mxu0
    %v268 = vpop.f32.mrb[0].mxu0
    %v269 = vadd.f32 0.0, %v268
    %v270 = vpop.f32.mrb[0].mxu0
    %271 = vdwg.mxu0
    %v272 = vadd.f32 %v212, %v266
    %v273 = vadd.f32 %v213, %v269
    %274 = vst.msk [vmem:[%s211] sm:$0xff] %vm97, %v272
    %275 = vst.msk [vmem:[%s211 + $0x8] sm:$0xff] %vm97, %v273
    // Predicated region
    $region30: #{multi_head_attention.3} parent=1 // pred_check
      %p276 = pneg %p61
    $region31: #{multi_head_attention.3} parent=1 // pred_check_branch
      %278 = sbr.rel (%p276) target = $region33
    $region32: #{multi_head_attention.3} parent=1 // pred_region
      %v279 = vld [vmem:[#allocation2] sm:$0xff]
      %v280 = vld [vmem:[#allocation2 + $0x8] sm:$0xff]
      %v281 = vld [vmem:[#allocation8] sm:$0x1]
      %v283 = vlaneseq
      %v284 = vshrl.u32 %v283, 7
      %v285 = vsub.s32 0, %v284
      %v286 = vrot.slane %v281, %v285
      %v288 = vadd.f32 %v279, %v286
      %v289 = vadd.f32 %v280, %v286
      %v290 = vpack.c.bf16 %v289, %v288
      %v292 = vunpack.c.l.b16 %v290
      %v293 = vunpack.c.h.b16 %v290
      %v294 = vpack.c.b16 %v292, %v292
      %v295 = vpack.c.b16 %v293, %v293
      %vm298 = vcmask 257024
      %299 = vst.msk [vmem:[#allocation9] sm:$0xf] %vm298, %v294
      %300 = vst.msk [vmem:[#allocation9 + $0x4] sm:$0xf] %vm298, %v295
      %v301 = vld [vmem:[%s146] sm:$0xff]
      %v302 = vld [vmem:[%s146 + $0x8] sm:$0xff]
      %s303 = scalar_lea.vmem [#allocation8], 1
      %v304 = vld [vmem:[%s303] sm:$0x1]
      %v306 = vlaneseq
      %v307 = vshrl.u32 %v306, 7
      %v308 = vsub.s32 0, %v307
      %v309 = vrot.slane %v304, %v308
      %v311 = vadd.f32 %v301, %v309
      %v312 = vadd.f32 %v302, %v309
      %v313 = vpack.c.bf16 %v312, %v311
      %v315 = vunpack.c.l.b16 %v313
      %v316 = vunpack.c.h.b16 %v313
      %v317 = vpack.c.b16 %v315, %v315
      %v318 = vpack.c.b16 %v316, %v316
      %321 = vst.msk [vmem:[#allocation10] sm:$0xf] %vm298, %v317
      %322 = vst.msk [vmem:[#allocation10 + $0x4] sm:$0xf] %vm298, %v318
      %v323 = vld [vmem:[%s211] sm:$0xff]
      %v324 = vld [vmem:[%s211 + $0x8] sm:$0xff]
      %s325 = scalar_lea.vmem [#allocation8], 2
      %v326 = vld [vmem:[%s325] sm:$0x1]
      %v328 = vlaneseq
      %v329 = vshrl.u32 %v328, 7
      %v330 = vsub.s32 0, %v329
      %v331 = vrot.slane %v326, %v330
      %v333 = vadd.f32 %v323, %v331
      %v334 = vadd.f32 %v324, %v331
      %v335 = vpack.c.bf16 %v334, %v333
      %v337 = vunpack.c.l.b16 %v335
      %v338 = vunpack.c.h.b16 %v335
      %v339 = vpack.c.b16 %v337, %v337
      %v340 = vpack.c.b16 %v338, %v338
      %343 = vst.msk [vmem:[#allocation12] sm:$0xf] %vm298, %v339
      %344 = vst.msk [vmem:[#allocation12 + $0x4] sm:$0xf] %vm298, %v340
    $region33: #{multi_head_attention.3} parent=1 // pred_fallthru
      _
    // Predicated region
    $region34: #{multi_head_attention.3} parent=1 // pred_check
      _
    $region35: #{multi_head_attention.3} parent=1 // pred_check_branch
      %346 = sbr.rel (0) target = $region37
    $region36: #{multi_head_attention.3} parent=1 // pred_region
      %s348 = ssub.s32 128, 128
      %349 = vsyncadd [#allocation5], %s348
      %s350 = sshll.u32 [#allocation9], 4
      %s351 = int_to_ptr.vmem [resolvable:$true] %s350
      %356 = dma.vmem_to_hbm [thread:$0]  %s351, 128, %s3, [#allocation5], 64, 64, 4
    $region37: #{multi_head_attention.3} parent=1 // pred_fallthru
      _
    // Predicated region
    $region38: #{multi_head_attention.3} parent=1 // pred_check
      _
    $region39: #{multi_head_attention.3} parent=1 // pred_check_branch
      %358 = sbr.rel (0) target = $region41
    $region40: #{multi_head_attention.3} parent=1 // pred_region
      %s360 = ssub.s32 128, 128
      %361 = vsyncadd [#allocation11], %s360
      %s362 = sshll.u32 [#allocation10], 4
      %s363 = int_to_ptr.vmem [resolvable:$true] %s362
      %368 = dma.vmem_to_hbm [thread:$0]  %s363, 128, %s4, [#allocation11], 64, 64, 4
    $region41: #{multi_head_attention.3} parent=1 // pred_fallthru
      _
    // Predicated region
    $region42: #{multi_head_attention.3} parent=1 // pred_check
      _
    $region43: #{multi_head_attention.3} parent=1 // pred_check_branch
      %370 = sbr.rel (0) target = $region45
    $region44: #{multi_head_attention.3} parent=1 // pred_region
      %s372 = ssub.s32 128, 128
      %373 = vsyncadd [#allocation11], %s372
      %s374 = sshll.u32 [#allocation12], 4
      %s375 = int_to_ptr.vmem [resolvable:$true] %s374
      %380 = dma.vmem_to_hbm [thread:$0]  %s375, 128, %s5, [#allocation11], 64, 64, 4
    $region45: #{multi_head_attention.3} parent=1 // pred_fallthru
      _
    // Predicated region
    $region46: #{multi_head_attention.3} parent=1 // pred_check
      _
    $region47: #{multi_head_attention.3} parent=1 // pred_check_branch
      %382 = sbr.rel (0) target = $region49
    $region48: #{multi_head_attention.3} parent=1 // pred_region
      %383 = dma.done [#allocation5], 128
    $region49: #{multi_head_attention.3} parent=1 // pred_fallthru
      _
    // Predicated region
    $region50: #{multi_head_attention.3} parent=1 // pred_check
      _
    $region51: #{multi_head_attention.3} parent=1 // pred_check_branch
      %385 = sbr.rel (0) target = $region53
    $region52: #{multi_head_attention.3} parent=1 // pred_region
      %386 = dma.done [#allocation11], 128
    $region53: #{multi_head_attention.3} parent=1 // pred_fallthru
      _
    // Predicated region
    $region54: #{multi_head_attention.3} parent=1 // pred_check
      _
    $region55: #{multi_head_attention.3} parent=1 // pred_check_branch
      %388 = sbr.rel (0) target = $region57
    $region56: #{multi_head_attention.3} parent=1 // pred_region
      %389 = dma.done [#allocation11], 128
    $region57: #{multi_head_attention.3} parent=1 // pred_fallthru
      _
    %390 = vsyncpa [#allocation4], 1
    %391 = vsyncpa [#allocation7], 1
    %392 = vsyncpa [#allocation5], 1
    %393 = vsyncpa [#allocation11], 1

// kernel: multi_head_attention.4
$region0: #{multi_head_attention.4}
  #allocation0 [shape = 'u32[]', space=smem, size = 0x4, offset = 0x4, fixed_abs, tag = 'smem constant byte address 0x4 - core index']
  #allocation1 [shape = 'u32[144,128]{1,0:T(1,128)}', space=vmem, size = 0x12000, scoped, tag = 'internal scratch']
  %s0 = inlined_call_operand.hbm [shape: bf16[2,8,32], index: 0, kind: input, shape index: {}]
  %s1 = inlined_call_operand.hbm [shape: bf16[2,8,32], index: 1, kind: input, shape index: {}]
  %s2 = inlined_call_operand.hbm [shape: bf16[2,8,32], index: 2, kind: input, shape index: {}]
  %s3 = inlined_call_operand.hbm [shape: bf16[2,8,32], index: 3, kind: output, shape index: {}]
  %s4 = sld [smem:[#allocation0]]
  $region64: #{multi_head_attention.4} parent=0
    _
  %s6 = ssub.s32 1, %s4
  %s7 = scalar_select 0, %s6, %s4
  $region1: #{multi_head_attention.4} parent=0
    #allocation2 [shape = 'u8[4096]{0}', space=vmem, size = 0x1000, scoped, tag = 'input window, operand 0']
    #allocation3 [shape = 's32[2]{0}', space=sflag, size = 0x8, scoped, tag = 'scoped memory for multi_head_attention.4']
    #allocation4 [shape = 's32[2]{0}', space=sflag, size = 0x8, scoped, tag = 'scoped memory for multi_head_attention.4']
    #allocation5 [shape = 'u8[4096]{0}', space=vmem, size = 0x1000, scoped, tag = 'input window, operand 1']
    #allocation6 [shape = 's32[2]{0}', space=sflag, size = 0x8, scoped, tag = 'scoped memory for multi_head_attention.4']
    #allocation7 [shape = 'u8[4096]{0}', space=vmem, size = 0x1000, scoped, tag = 'input window, operand 2']
    #allocation8 [shape = 'u8[4096]{0}', space=vmem, size = 0x1000, scoped, tag = 'output window, operand 0']
    %8 = vsyncpa [#allocation3], 0
    %s9 = scalar_lea.sflag [#allocation3], 1
    %10 = vsyncpa %s9, 0
    %11 = vsyncpa [#allocation6], 0
    %s12 = scalar_lea.sflag [#allocation6], 1
    %13 = vsyncpa %s12, 0
    %14 = vsyncpa [#allocation4], 0
    %s15 = scalar_lea.sflag [#allocation4], 1
    %16 = vsyncpa %s15, 0
    loop: start=0, step=1, limit=4
    $region2: #{multi_head_attention.4} parent=1 // loop_pre_header
      _
    $region3: #{multi_head_attention.4} parent=1 // loop_header
      %s18 = sphi 0, %s22
      %p19 = scmp.ge.s32.totalorder %s18, 4
      %s25 = sphi 0, %s37
      %s26 = sphi 0, %s33
      %s27 = sphi 0, %s25
      %s28 = sphi 0, %s26
      %s29 = sphi 0, %s27
      %s30 = sphi 0, %s28
      %s42 = sphi 0, %s44
      %s45 = sphi 0, %s42
      %s46 = sphi 0, %s45
      %s62 = sphi 0, %s46
      %s68 = sphi 0, %s70
      %s71 = sphi 0, %s68
      %s72 = sphi 0, %s71
      %s88 = sphi 0, %s72
      %s94 = sphi 0, %s96
      %s97 = sphi 0, %s94
      %s98 = sphi 0, %s97
      %s114 = sphi 0, %s98
      %s122 = sphi 0, %s124
      %s125 = sphi 0, %s122
      %s126 = sphi 0, %s125
      %s142 = sphi 0, %s126
    $region4: #{multi_head_attention.4} parent=1 // loop_header_branch
      %21 = sbr.rel (%p19) target = $region8
    $region5: #{multi_head_attention.4} parent=1 // loop_body
      %s23 = ssub.s32 %s18, 1
      %s24 = ssub.s32 %s18, 2
      %s31 = sadd.s32 1, %s26
      %p32 = scmp.ge.s32.totalorder %s31, 1
      %s33 = scalar_select %p32, 0, %s31
      %s34 = sadd.s32 1, %s25
      %s35 = scalar_select %p32, %s34, %s25
      %p36 = scmp.ge.s32.totalorder %s35, 2
      %s37 = scalar_select %p36, 0, %s35
      %s38 = ssub.s32 %s25, %s37
      %s39 = ssub.s32 %s26, %s33
      %s40 = sor.u32 %s38, %s39
      %p41 = scmp.eq.s32.totalorder %s40, 0
      %s43 = sadd.s32 %s42, 1
      %s44 = scalar_select %p41, %s42, %s43
      %p47 = pneg %p41
      %p48 = scmp.eq.s32.totalorder %s18, 1
      %p49 = por %p47, %p48
      %p50 = scmp.ne.s32.totalorder %s42, %s45
      %p51 = scmp.eq.s32.totalorder %s18, 0
      %p52 = por %p50, %p51
      %p53 = scmp.ne.s32.totalorder %s42, %s45
      %p54 = scmp.eq.s32.totalorder %s23, 1
      %p55 = por %p53, %p54
      %p56 = scmp.ne.s32.totalorder %s45, %s46
      %p57 = scmp.eq.s32.totalorder %s23, 0
      %p58 = por %p56, %p57
      %p59 = scmp.ne.s32.totalorder %s45, %s46
      %p60 = scmp.eq.s32.totalorder %s24, 1
      %p61 = por %p59, %p60
      %p63 = scmp.ne.s32.totalorder %s46, %s62
      %p64 = scmp.eq.s32.totalorder %s24, 0
      %p65 = por %p63, %p64
      %s66 = ssub.s32 %s25, %s37
      %p67 = scmp.eq.s32.totalorder %s66, 0
      %s69 = sadd.s32 %s68, 1
      %s70 = scalar_select %p67, %s68, %s69
      %p73 = pneg %p67
      %p74 = scmp.eq.s32.totalorder %s18, 1
      %p75 = por %p73, %p74
      %p76 = scmp.ne.s32.totalorder %s68, %s71
      %p77 = scmp.eq.s32.totalorder %s18, 0
      %p78 = por %p76, %p77
      %p79 = scmp.ne.s32.totalorder %s68, %s71
      %p80 = scmp.eq.s32.totalorder %s23, 1
      %p81 = por %p79, %p80
      %p82 = scmp.ne.s32.totalorder %s71, %s72
      %p83 = scmp.eq.s32.totalorder %s23, 0
      %p84 = por %p82, %p83
      %p85 = scmp.ne.s32.totalorder %s71, %s72
      %p86 = scmp.eq.s32.totalorder %s24, 1
      %p87 = por %p85, %p86
      %p89 = scmp.ne.s32.totalorder %s72, %s88
      %p90 = scmp.eq.s32.totalorder %s24, 0
      %p91 = por %p89, %p90
      %s92 = ssub.s32 %s25, %s37
      %p93 = scmp.eq.s32.totalorder %s92, 0
      %s95 = sadd.s32 %s94, 1
      %s96 = scalar_select %p93, %s94, %s95
      %p99 = pneg %p93
      %p100 = scmp.eq.s32.totalorder %s18, 1
      %p101 = por %p99, %p100
      %p102 = scmp.ne.s32.totalorder %s94, %s97
      %p103 = scmp.eq.s32.totalorder %s18, 0
      %p104 = por %p102, %p103
      %p105 = scmp.ne.s32.totalorder %s94, %s97
      %p106 = scmp.eq.s32.totalorder %s23, 1
      %p107 = por %p105, %p106
      %p108 = scmp.ne.s32.totalorder %s97, %s98
      %p109 = scmp.eq.s32.totalorder %s23, 0
      %p110 = por %p108, %p109
      %p111 = scmp.ne.s32.totalorder %s97, %s98
      %p112 = scmp.eq.s32.totalorder %s24, 1
      %p113 = por %p111, %p112
      %p115 = scmp.ne.s32.totalorder %s98, %s114
      %p116 = scmp.eq.s32.totalorder %s24, 0
      %p117 = por %p115, %p116
      %s118 = ssub.s32 %s25, %s37
      %s119 = ssub.s32 %s26, %s33
      %s120 = sor.u32 %s118, %s119
      %p121 = scmp.eq.s32.totalorder %s120, 0
      %s123 = sadd.s32 %s122, 1
      %s124 = scalar_select %p121, %s122, %s123
      %p127 = pneg %p121
      %p128 = scmp.eq.s32.totalorder %s18, 1
      %p129 = por %p127, %p128
      %p130 = scmp.ne.s32.totalorder %s122, %s125
      %p131 = scmp.eq.s32.totalorder %s18, 0
      %p132 = por %p130, %p131
      %p133 = scmp.ne.s32.totalorder %s122, %s125
      %p134 = scmp.eq.s32.totalorder %s23, 1
      %p135 = por %p133, %p134
      %p136 = scmp.ne.s32.totalorder %s125, %s126
      %p137 = scmp.eq.s32.totalorder %s23, 0
      %p138 = por %p136, %p137
      %p139 = scmp.ne.s32.totalorder %s125, %s126
      %p140 = scmp.eq.s32.totalorder %s24, 1
      %p141 = por %p139, %p140
      %p143 = scmp.ne.s32.totalorder %s126, %s142
      %p144 = scmp.eq.s32.totalorder %s24, 0
      %p145 = por %p143, %p144
      %p146 = scmp.le.s32.totalorder 1, %s18
      %p147 = scmp.lt.s32.totalorder %s18, 3
      %p148 = pnand %p146, %p147
      %p149 = pneg %p148
      // Predicated region
      $region9: #{multi_head_attention.4} parent=5 // pred_check
        _
      $region10: #{multi_head_attention.4} parent=5 // pred_check_branch
        %151 = sbr.rel (%p148) target = $region12
      $region11: #{multi_head_attention.4} parent=5 // pred_region
        %s152 = ssub.s32 %s18, 1
      $region12: #{multi_head_attention.4} parent=5 // pred_fallthru
        _
      %p153 = scmp.lt.s32.totalorder %s18, 2
      // Predicated region
      $region13: #{multi_head_attention.4} parent=5 // pred_check
        %p154 = pneg %p153
      $region14: #{multi_head_attention.4} parent=5 // pred_check_branch
        %156 = sbr.rel (%p154) target = $region16
      $region15: #{multi_head_attention.4} parent=5 // pred_region
        // Predicated region
        $region17: #{multi_head_attention.4} parent=15 // pred_check
          %p157 = pneg %p52
        $region18: #{multi_head_attention.4} parent=15 // pred_check_branch
          %159 = sbr.rel (%p157) target = $region20
        $region19: #{multi_head_attention.4} parent=15 // pred_region
          %s160 = sand.u32 %s42, 1
          %s161 = scalar_lea.sflag [#allocation3], %s160
          %s162 = sand.u32 %s42, 1
          %s163 = smul.addr %s162, 4
          %s164 = scalar_lea.vmem [#allocation2], %s163
          %s166 = ssub.s32 64, 64
          %167 = vsyncadd %s161, %s166
          %s168 = sadd.s32 %s26, %s25
          %s169 = smul.addr %s168, 64
          %s170 = scalar_lea.hbm %s0, %s169
          %s172 = sshll.u32 %s164, 4
          %s173 = int_to_ptr.vmem [resolvable:$true] %s172
          %175 = dma.hbm_to_vmem [thread:$0]  %s170, 64, %s173, %s161
        $region20: #{multi_head_attention.4} parent=15 // pred_fallthru
          _
        // Predicated region
        $region21: #{multi_head_attention.4} parent=15 // pred_check
          %p176 = pneg %p78
        $region22: #{multi_head_attention.4} parent=15 // pred_check_branch
          %178 = sbr.rel (%p176) target = $region24
        $region23: #{multi_head_attention.4} parent=15 // pred_region
          %s179 = sand.u32 %s18, 1
          %s180 = scalar_lea.sflag [#allocation6], %s179
          %s181 = sand.u32 %s68, 1
          %s182 = smul.addr %s181, 4
          %s183 = scalar_lea.vmem [#allocation5], %s182
          %s185 = ssub.s32 64, 64
          %186 = vsyncadd %s180, %s185
          %s187 = smul.addr %s25, 64
          %s188 = scalar_lea.hbm %s1, %s187
          %s190 = sshll.u32 %s183, 4
          %s191 = int_to_ptr.vmem [resolvable:$true] %s190
          %193 = dma.hbm_to_vmem [thread:$0]  %s188, 64, %s191, %s180
        $region24: #{multi_head_attention.4} parent=15 // pred_fallthru
          _
        // Predicated region
        $region25: #{multi_head_attention.4} parent=15 // pred_check
          %p194 = pneg %p104
        $region26: #{multi_head_attention.4} parent=15 // pred_check_branch
          %196 = sbr.rel (%p194) target = $region28
        $region27: #{multi_head_attention.4} parent=15 // pred_region
          %s197 = sand.u32 %s18, 1
          %s198 = scalar_lea.sflag [#allocation6], %s197
          %s199 = sand.u32 %s94, 1
          %s200 = smul.addr %s199, 4
          %s201 = scalar_lea.vmem [#allocation7], %s200
          %s203 = ssub.s32 64, 64
          %204 = vsyncadd %s198, %s203
          %s205 = smul.addr %s25, 64
          %s206 = scalar_lea.hbm %s2, %s205
          %s208 = sshll.u32 %s201, 4
          %s209 = int_to_ptr.vmem [resolvable:$true] %s208
          %211 = dma.hbm_to_vmem [thread:$0]  %s206, 64, %s209, %s198
        $region28: #{multi_head_attention.4} parent=15 // pred_fallthru
          _
      $region16: #{multi_head_attention.4} parent=5 // pred_fallthru
        _
      %p212 = scmp.le.s32.totalorder 1, %s18
      %p213 = scmp.lt.s32.totalorder %s18, 3
      %p214 = pnand %p212, %p213
      %p215 = pneg %p214
      // Predicated region
      $region29: #{multi_head_attention.4} parent=5 // pred_check
        _
      $region30: #{multi_head_attention.4} parent=5 // pred_check_branch
        %217 = sbr.rel (%p214) target = $region32
      $region31: #{multi_head_attention.4} parent=5 // pred_region
        %s218 = ssub.s32 %s18, 1
        %s219 = sand.u32 %s45, 1
        %s220 = scalar_lea.sflag [#allocation3], %s219
        %s221 = sand.u32 %s45, 1
        %s222 = smul.addr %s221, 4
        %s223 = scalar_lea.vmem [#allocation2], %s222
        // Predicated region
        $region33: #{multi_head_attention.4} parent=31 // pred_check
          %p224 = pneg %p58
        $region34: #{multi_head_attention.4} parent=31 // pred_check_branch
          %226 = sbr.rel (%p224) target = $region36
        $region35: #{multi_head_attention.4} parent=31 // pred_region
          %227 = dma.done %s220, 64
        $region36: #{multi_head_attention.4} parent=31 // pred_fallthru
          _
        %s228 = sand.u32 %s23, 1
        %s229 = scalar_lea.sflag [#allocation6], %s228
        %s230 = sand.u32 %s71, 1
        %s231 = smul.addr %s230, 4
        %s232 = scalar_lea.vmem [#allocation5], %s231
        // Predicated region
        $region37: #{multi_head_attention.4} parent=31 // pred_check
          %p233 = pneg %p84
        $region38: #{multi_head_attention.4} parent=31 // pred_check_branch
          %235 = sbr.rel (%p233) target = $region40
        $region39: #{multi_head_attention.4} parent=31 // pred_region
          %236 = dma.done %s229, 64
        $region40: #{multi_head_attention.4} parent=31 // pred_fallthru
          _
        %s237 = sand.u32 %s23, 1
        %s238 = scalar_lea.sflag [#allocation6], %s237
        %s239 = sand.u32 %s97, 1
        %s240 = smul.addr %s239, 4
        %s241 = scalar_lea.vmem [#allocation7], %s240
        // Predicated region
        $region41: #{multi_head_attention.4} parent=31 // pred_check
          %p242 = pneg %p110
        $region42: #{multi_head_attention.4} parent=31 // pred_check_branch
          %244 = sbr.rel (%p242) target = $region44
        $region43: #{multi_head_attention.4} parent=31 // pred_region
          %245 = dma.done %s238, 64
        $region44: #{multi_head_attention.4} parent=31 // pred_fallthru
          _
        %s246 = sand.u32 %s45, 1
        %s247 = scalar_lea.sflag [#allocation3], %s246
        %s248 = sand.u32 %s45, 1
        %s249 = smul.addr %s248, 4
        %s250 = scalar_lea.vmem [#allocation2], %s249
        %p251 = pneg %p58
        %p252 = pneg %p55
        %s253 = sand.u32 %s23, 1
        %s254 = scalar_lea.sflag [#allocation6], %s253
        %s255 = sand.u32 %s71, 1
        %s256 = smul.addr %s255, 4
        %s257 = scalar_lea.vmem [#allocation5], %s256
        %p258 = pneg %p84
        %p259 = pneg %p81
        %s260 = sand.u32 %s23, 1
        %s261 = scalar_lea.sflag [#allocation6], %s260
        %s262 = sand.u32 %s97, 1
        %s263 = smul.addr %s262, 4
        %s264 = scalar_lea.vmem [#allocation7], %s263
        %p265 = pneg %p110
        %p266 = pneg %p107
        %p267 = pneg %p138
        %p268 = pneg %p135
        %s269 = sand.u32 %s125, 1
        %s270 = scalar_lea.sflag [#allocation4], %s269
        %s271 = sand.u32 %s125, 1
        %s272 = smul.addr %s271, 4
        %s273 = scalar_lea.vmem [#allocation8], %s272
        %v275 = vld [vmem:[%s223] sm:$0xf]
        %v276 = vlaneseq
        %v277 = vand.u32 %v276, 127
        %v278 = vlaneseq
        %v279 = vshrl.u32 %v278, 7
        %vm280 = vcmp.gt.s32.totalorder %v277, %v279
        // While loop
        $region45: #{multi_head_attention.4} parent=31 // loop_pre_header
          _
        $region46: #{multi_head_attention.4} parent=31 // loop_header
          %s282 = sphi 0, %s284
          %p283 = scmp.ge.s32.totalorder %s282, %s28
          %v287 = vphi -1e+30, %v358
          %v288 = vphi 0.0, %v369
          %v289 = vphi 0.0, %v419
          %v290 = vphi -1e+30, %v479
          %v291 = vphi 0.0, %v490
          %v292 = vphi 0.0, %v544
          %v293 = vphi -1e+30, %v598
          %v294 = vphi 0.0, %v609
          %v295 = vphi 0.0, %v660
          %v296 = vphi -1e+30, %v714
          %v297 = vphi 0.0, %v725
          %v298 = vphi 0.0, %v776
        $region47: #{multi_head_attention.4} parent=31 // loop_header_branch
          %286 = sbr.rel (%p283) target = $region51
        $region48: #{multi_head_attention.4} parent=31 // loop_body
          %s299 = smul.u32 %s282, 8
          %s300 = sshra.s32 %s299, 3
          %s301 = sand.u32 %s299, 7
          %s302 = smul.addr %s300, 4
          %s303 = scalar_lea.vmem %s232, %s302 [#allocation5]
          %v304 = vld [vmem:[%s303] sm:$0xf]
          %s305 = smul.addr %s300, 4
          %s306 = scalar_lea.vmem %s241, %s305 [#allocation7]
          %v307 = vld [vmem:[%s306] sm:$0xf]
          %vm308 = vcmask 64512
          %v310 = vsel %vm308, %v275, 0
          %v313 = vsel %vm308, %v304, 0
          %315 = vmatprep.subr.bf16.mxu0 0
          %316 = vmatpush1.bf16.xpose.msra.mxu0 %v313
          %317 = vmatprep.subr.bf16.mxu0 0
          %318 = vmatpush1.bf16.xpose.msra.mxu0 0
          %319 = vmatprep.subr.bf16.mxu0 0
          %320 = vmatpush1.bf16.xpose.msra.mxu0 0
          %321 = vmatprep.subr.bf16.mxu0 0
          %322 = vmatpush1.bf16.xpose.msra.mxu0 0
          %323 = vmatprep.subr.bf16.mxu0 0
          %324 = vmatpush1.bf16.xpose.msra.mxu0 0
          %325 = vmatprep.subr.bf16.mxu0 0
          %326 = vmatpush1.bf16.xpose.msra.mxu0 0
          %327 = vmatprep.subr.bf16.mxu0 0
          %328 = vmatpush1.bf16.xpose.msra.mxu0 0
          %329 = vmatprep.subr.bf16.mxu0 0
          %330 = vmatpush1.bf16.xpose.msra.mxu0 0
          %331 = vmatprep.subr.bf16.mxu0 0
          %332 = vmatpush1.bf16.xpose.msra.mxu0 0
          %333 = vmatprep.subr.bf16.mxu0 0
          %334 = vmatpush1.bf16.xpose.msra.mxu0 0
          %335 = vmatprep.subr.bf16.mxu0 0
          %336 = vmatpush1.bf16.xpose.msra.mxu0 0
          %337 = vmatprep.subr.bf16.mxu0 0
          %338 = vmatpush1.bf16.xpose.msra.mxu0 0
          %339 = vmatprep.subr.bf16.mxu0 0
          %340 = vmatpush1.bf16.xpose.msra.mxu0 0
          %341 = vmatprep.subr.bf16.mxu0 0
          %342 = vmatpush1.bf16.xpose.msra.mxu0 0
          %343 = vmatprep.subr.bf16.mxu0 0
          %344 = vmatpush1.bf16.xpose.msra.mxu0 0
          %345 = vmatprep.subr.bf16.mxu0 0
          %346 = vmatpush1.bf16.xpose.msra.mxu0 0
          %347 = vmatprep.mubr.bf16.mxu0 0
          %348 = vmatmul.mubr.bf16.gmra.mrb[0].mxu0 %v310
          %v349 = vpop.f32.mrb[0].mxu0
          %v350 = vadd.f32 0.0, %v349
          %v351 = vpop.f32.mrb[0].mxu0
          %v352 = vpop.f32.mrb[0].mxu0
          %v353 = vpop.f32.mrb[0].mxu0
          %354 = vdwg.mxu0
          %v355 = vsel %vm308, %v350, -inf
          %356 = vmax.xlane.f32.xlu0 %v355
          %v357 = vpop.xlane.xlu0 %356
          %v358 = vmax.f32 %v287, %v357
          %v359 = vsub.f32 %v287, %v358
          %v360 = vmul.f32 %v359, 1.442695
          %v361 = vpow.pop %v360
          %v362 = vsub.f32 %v350, %v358
          %v363 = vmul.f32 %v362, 1.442695
          %v364 = vpow.pop %v363
          %v365 = vmul.f32 %v361, %v288
          %v366 = vsel %vm308, %v364, 0.0
          %367 = vadd.xlane.f32.xlu0 %v366
          %v368 = vpop.xlane.xlu0 %367
          %v369 = vadd.f32 %v365, %v368
          %v370 = vmul.f32 %v361, %v289
          %v371 = vpack.c.bf16 %v364, %v364
          %v373 = vsel %vm308, %v371, 0
          %vm375 = vcmask 1043456
          %v377 = vsel %vm375, %v307, 0
          %379 = vmatprep.subr.bf16.mxu0 0
          %380 = vmatpush1.bf16.msra.mxu0 %v377
          %381 = vmatprep.subr.bf16.mxu0 0
          %382 = vmatpush1.bf16.msra.mxu0 0
          %383 = vmatprep.subr.bf16.mxu0 0
          %384 = vmatpush1.bf16.msra.mxu0 0
          %385 = vmatprep.subr.bf16.mxu0 0
          %386 = vmatpush1.bf16.msra.mxu0 0
          %387 = vmatprep.subr.bf16.mxu0 0
          %388 = vmatpush1.bf16.msra.mxu0 0
          %389 = vmatprep.subr.bf16.mxu0 0
          %390 = vmatpush1.bf16.msra.mxu0 0
          %391 = vmatprep.subr.bf16.mxu0 0
          %392 = vmatpush1.bf16.msra.mxu0 0
          %393 = vmatprep.subr.bf16.mxu0 0
          %394 = vmatpush1.bf16.msra.mxu0 0
          %395 = vmatprep.subr.bf16.mxu0 0
          %396 = vmatpush1.bf16.msra.mxu0 0
          %397 = vmatprep.subr.bf16.mxu0 0
          %398 = vmatpush1.bf16.msra.mxu0 0
          %399 = vmatprep.subr.bf16.mxu0 0
          %400 = vmatpush1.bf16.msra.mxu0 0
          %401 = vmatprep.subr.bf16.mxu0 0
          %402 = vmatpush1.bf16.msra.mxu0 0
          %403 = vmatprep.subr.bf16.mxu0 0
          %404 = vmatpush1.bf16.msra.mxu0 0
          %405 = vmatprep.subr.bf16.mxu0 0
          %406 = vmatpush1.bf16.msra.mxu0 0
          %407 = vmatprep.subr.bf16.mxu0 0
          %408 = vmatpush1.bf16.msra.mxu0 0
          %409 = vmatprep.subr.bf16.mxu0 0
          %410 = vmatpush1.bf16.msra.mxu0 0
          %411 = vmatprep.mubr.bf16.mxu0 0
          %412 = vmatmul.mubr.bf16.gmra.mrb[0].mxu0 %v373
          %v413 = vpop.f32.mrb[0].mxu0
          %v414 = vadd.f32 0.0, %v413
          %v415 = vpop.f32.mrb[0].mxu0
          %v416 = vpop.f32.mrb[0].mxu0
          %v417 = vpop.f32.mrb[0].mxu0
          %418 = vdwg.mxu0
          %v419 = vadd.f32 %v370, %v414
          %v421 = vunpack.c.l.b16 %v275
          %v422 = vpack.c.b16 %v421, %v421
          %423 = vrot.lane.b32.xlu0 %v422, 120
          %v424 = vpop.permute.xlu0 %423
          %v426 = vunpack.c.l.b16 %v304
          %v427 = vpack.c.b16 %v426, %v426
          %428 = vrot.lane.b32.xlu0 %v427, 120
          %v429 = vpop.permute.xlu0 %428
          %v431 = vsel %vm308, %v424, 0
          %v434 = vsel %vm308, %v429, 0
          %436 = vmatprep.subr.bf16.mxu0 0
          %437 = vmatpush1.bf16.xpose.msra.mxu0 %v434
          %438 = vmatprep.subr.bf16.mxu0 0
          %439 = vmatpush1.bf16.xpose.msra.mxu0 0
          %440 = vmatprep.subr.bf16.mxu0 0
          %441 = vmatpush1.bf16.xpose.msra.mxu0 0
          %442 = vmatprep.subr.bf16.mxu0 0
          %443 = vmatpush1.bf16.xpose.msra.mxu0 0
          %444 = vmatprep.subr.bf16.mxu0 0
          %445 = vmatpush1.bf16.xpose.msra.mxu0 0
          %446 = vmatprep.subr.bf16.mxu0 0
          %447 = vmatpush1.bf16.xpose.msra.mxu0 0
          %448 = vmatprep.subr.bf16.mxu0 0
          %449 = vmatpush1.bf16.xpose.msra.mxu0 0
          %450 = vmatprep.subr.bf16.mxu0 0
          %451 = vmatpush1.bf16.xpose.msra.mxu0 0
          %452 = vmatprep.subr.bf16.mxu0 0
          %453 = vmatpush1.bf16.xpose.msra.mxu0 0
          %454 = vmatprep.subr.bf16.mxu0 0
          %455 = vmatpush1.bf16.xpose.msra.mxu0 0
          %456 = vmatprep.subr.bf16.mxu0 0
          %457 = vmatpush1.bf16.xpose.msra.mxu0 0
          %458 = vmatprep.subr.bf16.mxu0 0
          %459 = vmatpush1.bf16.xpose.msra.mxu0 0
          %460 = vmatprep.subr.bf16.mxu0 0
          %461 = vmatpush1.bf16.xpose.msra.mxu0 0
          %462 = vmatprep.subr.bf16.mxu0 0
          %463 = vmatpush1.bf16.xpose.msra.mxu0 0
          %464 = vmatprep.subr.bf16.mxu0 0
          %465 = vmatpush1.bf16.xpose.msra.mxu0 0
          %466 = vmatprep.subr.bf16.mxu0 0
          %467 = vmatpush1.bf16.xpose.msra.mxu0 0
          %468 = vmatprep.mubr.bf16.mxu0 0
          %469 = vmatmul.mubr.bf16.gmra.mrb[0].mxu0 %v431
          %v470 = vpop.f32.mrb[0].mxu0
          %v471 = vadd.f32 0.0, %v470
          %v472 = vpop.f32.mrb[0].mxu0
          %v473 = vpop.f32.mrb[0].mxu0
          %v474 = vpop.f32.mrb[0].mxu0
          %475 = vdwg.mxu0
          %v476 = vsel %vm308, %v471, -inf
          %477 = vmax.xlane.f32.xlu0 %v476
          %v478 = vpop.xlane.xlu0 %477
          %v479 = vmax.f32 %v290, %v478
          %v480 = vsub.f32 %v290, %v479
          %v481 = vmul.f32 %v480, 1.442695
          %v482 = vpow.pop %v481
          %v483 = vsub.f32 %v471, %v479
          %v484 = vmul.f32 %v483, 1.442695
          %v485 = vpow.pop %v484
          %v486 = vmul.f32 %v482, %v291
          %v487 = vsel %vm308, %v485, 0.0
          %488 = vadd.xlane.f32.xlu0 %v487
          %v489 = vpop.xlane.xlu0 %488
          %v490 = vadd.f32 %v486, %v489
          %v491 = vmul.f32 %v482, %v292
          %v492 = vpack.c.bf16 %v485, %v485
          %v494 = vunpack.c.l.b16 %v307
          %v495 = vpack.c.b16 %v494, %v494
          %496 = vrot.lane.b32.xlu0 %v495, 120
          %v497 = vpop.permute.xlu0 %496
          %v499 = vsel %vm308, %v492, 0
          %v502 = vsel %vm375, %v497, 0
          %504 = vmatprep.subr.bf16.mxu0 0
          %505 = vmatpush1.bf16.msra.mxu0 %v502
          %506 = vmatprep.subr.bf16.mxu0 0
          %507 = vmatpush1.bf16.msra.mxu0 0
          %508 = vmatprep.subr.bf16.mxu0 0
          %509 = vmatpush1.bf16.msra.mxu0 0
          %510 = vmatprep.subr.bf16.mxu0 0
          %511 = vmatpush1.bf16.msra.mxu0 0
          %512 = vmatprep.subr.bf16.mxu0 0
          %513 = vmatpush1.bf16.msra.mxu0 0
          %514 = vmatprep.subr.bf16.mxu0 0
          %515 = vmatpush1.bf16.msra.mxu0 0
          %516 = vmatprep.subr.bf16.mxu0 0
          %517 = vmatpush1.bf16.msra.mxu0 0
          %518 = vmatprep.subr.bf16.mxu0 0
          %519 = vmatpush1.bf16.msra.mxu0 0
          %520 = vmatprep.subr.bf16.mxu0 0
          %521 = vmatpush1.bf16.msra.mxu0 0
          %522 = vmatprep.subr.bf16.mxu0 0
          %523 = vmatpush1.bf16.msra.mxu0 0
          %524 = vmatprep.subr.bf16.mxu0 0
          %525 = vmatpush1.bf16.msra.mxu0 0
          %526 = vmatprep.subr.bf16.mxu0 0
          %527 = vmatpush1.bf16.msra.mxu0 0
          %528 = vmatprep.subr.bf16.mxu0 0
          %529 = vmatpush1.bf16.msra.mxu0 0
          %530 = vmatprep.subr.bf16.mxu0 0
          %531 = vmatpush1.bf16.msra.mxu0 0
          %532 = vmatprep.subr.bf16.mxu0 0
          %533 = vmatpush1.bf16.msra.mxu0 0
          %534 = vmatprep.subr.bf16.mxu0 0
          %535 = vmatpush1.bf16.msra.mxu0 0
          %536 = vmatprep.mubr.bf16.mxu0 0
          %537 = vmatmul.mubr.bf16.gmra.mrb[0].mxu0 %v499
          %v538 = vpop.f32.mrb[0].mxu0
          %v539 = vadd.f32 0.0, %v538
          %v540 = vpop.f32.mrb[0].mxu0
          %v541 = vpop.f32.mrb[0].mxu0
          %v542 = vpop.f32.mrb[0].mxu0
          %543 = vdwg.mxu0
          %v544 = vadd.f32 %v491, %v539
          %545 = vrot.lane.b32.xlu0 %v422, 112
          %v546 = vpop.permute.xlu0 %545
          %547 = vrot.lane.b32.xlu0 %v427, 112
          %v548 = vpop.permute.xlu0 %547
          %v550 = vsel %vm308, %v546, 0
          %v553 = vsel %vm308, %v548, 0
          %555 = vmatprep.subr.bf16.mxu0 0
          %556 = vmatpush1.bf16.xpose.msra.mxu0 %v553
          %557 = vmatprep.subr.bf16.mxu0 0
          %558 = vmatpush1.bf16.xpose.msra.mxu0 0
          %559 = vmatprep.subr.bf16.mxu0 0
          %560 = vmatpush1.bf16.xpose.msra.mxu0 0
          %561 = vmatprep.subr.bf16.mxu0 0
          %562 = vmatpush1.bf16.xpose.msra.mxu0 0
          %563 = vmatprep.subr.bf16.mxu0 0
          %564 = vmatpush1.bf16.xpose.msra.mxu0 0
          %565 = vmatprep.subr.bf16.mxu0 0
          %566 = vmatpush1.bf16.xpose.msra.mxu0 0
          %567 = vmatprep.subr.bf16.mxu0 0
          %568 = vmatpush1.bf16.xpose.msra.mxu0 0
          %569 = vmatprep.subr.bf16.mxu0 0
          %570 = vmatpush1.bf16.xpose.msra.mxu0 0
          %571 = vmatprep.subr.bf16.mxu0 0
          %572 = vmatpush1.bf16.xpose.msra.mxu0 0
          %573 = vmatprep.subr.bf16.mxu0 0
          %574 = vmatpush1.bf16.xpose.msra.mxu0 0
          %575 = vmatprep.subr.bf16.mxu0 0
          %576 = vmatpush1.bf16.xpose.msra.mxu0 0
          %577 = vmatprep.subr.bf16.mxu0 0
          %578 = vmatpush1.bf16.xpose.msra.mxu0 0
          %579 = vmatprep.subr.bf16.mxu0 0
          %580 = vmatpush1.bf16.xpose.msra.mxu0 0
          %581 = vmatprep.subr.bf16.mxu0 0
          %582 = vmatpush1.bf16.xpose.msra.mxu0 0
          %583 = vmatprep.subr.bf16.mxu0 0
          %584 = vmatpush1.bf16.xpose.msra.mxu0 0
          %585 = vmatprep.subr.bf16.mxu0 0
          %586 = vmatpush1.bf16.xpose.msra.mxu0 0
          %587 = vmatprep.mubr.bf16.mxu0 0
          %588 = vmatmul.mubr.bf16.gmra.mrb[0].mxu0 %v550
          %v589 = vpop.f32.mrb[0].mxu0
          %v590 = vadd.f32 0.0, %v589
          %v591 = vpop.f32.mrb[0].mxu0
          %v592 = vpop.f32.mrb[0].mxu0
          %v593 = vpop.f32.mrb[0].mxu0
          %594 = vdwg.mxu0
          %v595 = vsel %vm308, %v590, -inf
          %596 = vmax.xlane.f32.xlu0 %v595
          %v597 = vpop.xlane.xlu0 %596
          %v598 = vmax.f32 %v293, %v597
          %v599 = vsub.f32 %v293, %v598
          %v600 = vmul.f32 %v599, 1.442695
          %v601 = vpow.pop %v600
          %v602 = vsub.f32 %v590, %v598
          %v603 = vmul.f32 %v602, 1.442695
          %v604 = vpow.pop %v603
          %v605 = vmul.f32 %v601, %v294
          %v606 = vsel %vm308, %v604, 0.0
          %607 = vadd.xlane.f32.xlu0 %v606
          %v608 = vpop.xlane.xlu0 %607
          %v609 = vadd.f32 %v605, %v608
          %v610 = vmul.f32 %v601, %v295
          %v611 = vpack.c.bf16 %v604, %v604
          %612 = vrot.lane.b32.xlu0 %v495, 112
          %v613 = vpop.permute.xlu0 %612
          %v615 = vsel %vm308, %v611, 0
          %v618 = vsel %vm375, %v613, 0
          %620 = vmatprep.subr.bf16.mxu0 0
          %621 = vmatpush1.bf16.msra.mxu0 %v618
          %622 = vmatprep.subr.bf16.mxu0 0
          %623 = vmatpush1.bf16.msra.mxu0 0
          %624 = vmatprep.subr.bf16.mxu0 0
          %625 = vmatpush1.bf16.msra.mxu0 0
          %626 = vmatprep.subr.bf16.mxu0 0
          %627 = vmatpush1.bf16.msra.mxu0 0
          %628 = vmatprep.subr.bf16.mxu0 0
          %629 = vmatpush1.bf16.msra.mxu0 0
          %630 = vmatprep.subr.bf16.mxu0 0
          %631 = vmatpush1.bf16.msra.mxu0 0
          %632 = vmatprep.subr.bf16.mxu0 0
          %633 = vmatpush1.bf16.msra.mxu0 0
          %634 = vmatprep.subr.bf16.mxu0 0
          %635 = vmatpush1.bf16.msra.mxu0 0
          %636 = vmatprep.subr.bf16.mxu0 0
          %637 = vmatpush1.bf16.msra.mxu0 0
          %638 = vmatprep.subr.bf16.mxu0 0
          %639 = vmatpush1.bf16.msra.mxu0 0
          %640 = vmatprep.subr.bf16.mxu0 0
          %641 = vmatpush1.bf16.msra.mxu0 0
          %642 = vmatprep.subr.bf16.mxu0 0
          %643 = vmatpush1.bf16.msra.mxu0 0
          %644 = vmatprep.subr.bf16.mxu0 0
          %645 = vmatpush1.bf16.msra.mxu0 0
          %646 = vmatprep.subr.bf16.mxu0 0
          %647 = vmatpush1.bf16.msra.mxu0 0
          %648 = vmatprep.subr.bf16.mxu0 0
          %649 = vmatpush1.bf16.msra.mxu0 0
          %650 = vmatprep.subr.bf16.mxu0 0
          %651 = vmatpush1.bf16.msra.mxu0 0
          %652 = vmatprep.mubr.bf16.mxu0 0
          %653 = vmatmul.mubr.bf16.gmra.mrb[0].mxu0 %v615
          %v654 = vpop.f32.mrb[0].mxu0
          %v655 = vadd.f32 0.0, %v654
          %v656 = vpop.f32.mrb[0].mxu0
          %v657 = vpop.f32.mrb[0].mxu0
          %v658 = vpop.f32.mrb[0].mxu0
          %659 = vdwg.mxu0
          %v660 = vadd.f32 %v610, %v655
          %661 = vrot.lane.b32.xlu0 %v422, 104
          %v662 = vpop.permute.xlu0 %661
          %663 = vrot.lane.b32.xlu0 %v427, 104
          %v664 = vpop.permute.xlu0 %663
          %v666 = vsel %vm308, %v662, 0
          %v669 = vsel %vm308, %v664, 0
          %671 = vmatprep.subr.bf16.mxu0 0
          %672 = vmatpush1.bf16.xpose.msra.mxu0 %v669
          %673 = vmatprep.subr.bf16.mxu0 0
          %674 = vmatpush1.bf16.xpose.msra.mxu0 0
          %675 = vmatprep.subr.bf16.mxu0 0
          %676 = vmatpush1.bf16.xpose.msra.mxu0 0
          %677 = vmatprep.subr.bf16.mxu0 0
          %678 = vmatpush1.bf16.xpose.msra.mxu0 0
          %679 = vmatprep.subr.bf16.mxu0 0
          %680 = vmatpush1.bf16.xpose.msra.mxu0 0
          %681 = vmatprep.subr.bf16.mxu0 0
          %682 = vmatpush1.bf16.xpose.msra.mxu0 0
          %683 = vmatprep.subr.bf16.mxu0 0
          %684 = vmatpush1.bf16.xpose.msra.mxu0 0
          %685 = vmatprep.subr.bf16.mxu0 0
          %686 = vmatpush1.bf16.xpose.msra.mxu0 0
          %687 = vmatprep.subr.bf16.mxu0 0
          %688 = vmatpush1.bf16.xpose.msra.mxu0 0
          %689 = vmatprep.subr.bf16.mxu0 0
          %690 = vmatpush1.bf16.xpose.msra.mxu0 0
          %691 = vmatprep.subr.bf16.mxu0 0
          %692 = vmatpush1.bf16.xpose.msra.mxu0 0
          %693 = vmatprep.subr.bf16.mxu0 0
          %694 = vmatpush1.bf16.xpose.msra.mxu0 0
          %695 = vmatprep.subr.bf16.mxu0 0
          %696 = vmatpush1.bf16.xpose.msra.mxu0 0
          %697 = vmatprep.subr.bf16.mxu0 0
          %698 = vmatpush1.bf16.xpose.msra.mxu0 0
          %699 = vmatprep.subr.bf16.mxu0 0
          %700 = vmatpush1.bf16.xpose.msra.mxu0 0
          %701 = vmatprep.subr.bf16.mxu0 0
          %702 = vmatpush1.bf16.xpose.msra.mxu0 0
          %703 = vmatprep.mubr.bf16.mxu0 0
          %704 = vmatmul.mubr.bf16.gmra.mrb[0].mxu0 %v666
          %v705 = vpop.f32.mrb[0].mxu0
          %v706 = vadd.f32 0.0, %v705
          %v707 = vpop.f32.mrb[0].mxu0
          %v708 = vpop.f32.mrb[0].mxu0
          %v709 = vpop.f32.mrb[0].mxu0
          %710 = vdwg.mxu0
          %v711 = vsel %vm308, %v706, -inf
          %712 = vmax.xlane.f32.xlu0 %v711
          %v713 = vpop.xlane.xlu0 %712
          %v714 = vmax.f32 %v296, %v713
          %v715 = vsub.f32 %v296, %v714
          %v716 = vmul.f32 %v715, 1.442695
          %v717 = vpow.pop %v716
          %v718 = vsub.f32 %v706, %v714
          %v719 = vmul.f32 %v718, 1.442695
          %v720 = vpow.pop %v719
          %v721 = vmul.f32 %v717, %v297
          %v722 = vsel %vm308, %v720, 0.0
          %723 = vadd.xlane.f32.xlu0 %v722
          %v724 = vpop.xlane.xlu0 %723
          %v725 = vadd.f32 %v721, %v724
          %v726 = vmul.f32 %v717, %v298
          %v727 = vpack.c.bf16 %v720, %v720
          %728 = vrot.lane.b32.xlu0 %v495, 104
          %v729 = vpop.permute.xlu0 %728
          %v731 = vsel %vm308, %v727, 0
          %v734 = vsel %vm375, %v729, 0
          %736 = vmatprep.subr.bf16.mxu0 0
          %737 = vmatpush1.bf16.msra.mxu0 %v734
          %738 = vmatprep.subr.bf16.mxu0 0
          %739 = vmatpush1.bf16.msra.mxu0 0
          %740 = vmatprep.subr.bf16.mxu0 0
          %741 = vmatpush1.bf16.msra.mxu0 0
          %742 = vmatprep.subr.bf16.mxu0 0
          %743 = vmatpush1.bf16.msra.mxu0 0
          %744 = vmatprep.subr.bf16.mxu0 0
          %745 = vmatpush1.bf16.msra.mxu0 0
          %746 = vmatprep.subr.bf16.mxu0 0
          %747 = vmatpush1.bf16.msra.mxu0 0
          %748 = vmatprep.subr.bf16.mxu0 0
          %749 = vmatpush1.bf16.msra.mxu0 0
          %750 = vmatprep.subr.bf16.mxu0 0
          %751 = vmatpush1.bf16.msra.mxu0 0
          %752 = vmatprep.subr.bf16.mxu0 0
          %753 = vmatpush1.bf16.msra.mxu0 0
          %754 = vmatprep.subr.bf16.mxu0 0
          %755 = vmatpush1.bf16.msra.mxu0 0
          %756 = vmatprep.subr.bf16.mxu0 0
          %757 = vmatpush1.bf16.msra.mxu0 0
          %758 = vmatprep.subr.bf16.mxu0 0
          %759 = vmatpush1.bf16.msra.mxu0 0
          %760 = vmatprep.subr.bf16.mxu0 0
          %761 = vmatpush1.bf16.msra.mxu0 0
          %762 = vmatprep.subr.bf16.mxu0 0
          %763 = vmatpush1.bf16.msra.mxu0 0
          %764 = vmatprep.subr.bf16.mxu0 0
          %765 = vmatpush1.bf16.msra.mxu0 0
          %766 = vmatprep.subr.bf16.mxu0 0
          %767 = vmatpush1.bf16.msra.mxu0 0
          %768 = vmatprep.mubr.bf16.mxu0 0
          %769 = vmatmul.mubr.bf16.gmra.mrb[0].mxu0 %v731
          %v770 = vpop.f32.mrb[0].mxu0
          %v771 = vadd.f32 0.0, %v770
          %v772 = vpop.f32.mrb[0].mxu0
          %v773 = vpop.f32.mrb[0].mxu0
          %v774 = vpop.f32.mrb[0].mxu0
          %775 = vdwg.mxu0
          %v776 = vadd.f32 %v726, %v771
        $region49: #{multi_head_attention.4} parent=31 // loop_footer
          %s284 = sadd.s32 %s282, 1
        $region50: #{multi_head_attention.4} parent=31 // loop_footer_branch
          %281 = sbr.rel target = $region46
        $region51: #{multi_head_attention.4} parent=31 // loop_exit
          _
        %s777 = smul.u32 %s28, 8
        %s778 = sshra.s32 %s777, 3
        %s779 = sand.u32 %s777, 7
        %s780 = smul.addr %s778, 4
        %s781 = scalar_lea.vmem %s232, %s780 [#allocation5]
        %v782 = vld [vmem:[%s781] sm:$0xf]
        %s783 = smul.addr %s778, 4
        %s784 = scalar_lea.vmem %s241, %s783 [#allocation7]
        %v785 = vld [vmem:[%s784] sm:$0xf]
        %vm786 = vcmask 64512
        %v788 = vsel %vm786, %v275, 0
        %v791 = vsel %vm786, %v782, 0
        %793 = vmatprep.subr.bf16.mxu0 0
        %794 = vmatpush1.bf16.xpose.msra.mxu0 %v791
        %795 = vmatprep.subr.bf16.mxu0 0
        %796 = vmatpush1.bf16.xpose.msra.mxu0 0
        %797 = vmatprep.subr.bf16.mxu0 0
        %798 = vmatpush1.bf16.xpose.msra.mxu0 0
        %799 = vmatprep.subr.bf16.mxu0 0
        %800 = vmatpush1.bf16.xpose.msra.mxu0 0
        %801 = vmatprep.subr.bf16.mxu0 0
        %802 = vmatpush1.bf16.xpose.msra.mxu0 0
        %803 = vmatprep.subr.bf16.mxu0 0
        %804 = vmatpush1.bf16.xpose.msra.mxu0 0
        %805 = vmatprep.subr.bf16.mxu0 0
        %806 = vmatpush1.bf16.xpose.msra.mxu0 0
        %807 = vmatprep.subr.bf16.mxu0 0
        %808 = vmatpush1.bf16.xpose.msra.mxu0 0
        %809 = vmatprep.subr.bf16.mxu0 0
        %810 = vmatpush1.bf16.xpose.msra.mxu0 0
        %811 = vmatprep.subr.bf16.mxu0 0
        %812 = vmatpush1.bf16.xpose.msra.mxu0 0
        %813 = vmatprep.subr.bf16.mxu0 0
        %814 = vmatpush1.bf16.xpose.msra.mxu0 0
        %815 = vmatprep.subr.bf16.mxu0 0
        %816 = vmatpush1.bf16.xpose.msra.mxu0 0
        %817 = vmatprep.subr.bf16.mxu0 0
        %818 = vmatpush1.bf16.xpose.msra.mxu0 0
        %819 = vmatprep.subr.bf16.mxu0 0
        %820 = vmatpush1.bf16.xpose.msra.mxu0 0
        %821 = vmatprep.subr.bf16.mxu0 0
        %822 = vmatpush1.bf16.xpose.msra.mxu0 0
        %823 = vmatprep.subr.bf16.mxu0 0
        %824 = vmatpush1.bf16.xpose.msra.mxu0 0
        %825 = vmatprep.mubr.bf16.mxu0 0
        %826 = vmatmul.mubr.bf16.gmra.mrb[0].mxu0 %v788
        %v827 = vpop.f32.mrb[0].mxu0
        %v828 = vadd.f32 0.0, %v827
        %v829 = vpop.f32.mrb[0].mxu0
        %v830 = vpop.f32.mrb[0].mxu0
        %v831 = vpop.f32.mrb[0].mxu0
        %832 = vdwg.mxu0
        %v833 = vsel %vm280, -1e+30, %v828
        %v834 = vsel %vm786, %v833, -inf
        %835 = vmax.xlane.f32.xlu0 %v834
        %v836 = vpop.xlane.xlu0 %835
        %v837 = vmax.f32 %v287, %v836
        %v838 = vsub.f32 %v287, %v837
        %v839 = vmul.f32 %v838, 1.442695
        %v840 = vpow.pop %v839
        %v841 = vsub.f32 %v833, %v837
        %v842 = vmul.f32 %v841, 1.442695
        %v843 = vpow.pop %v842
        %v844 = vmul.f32 %v840, %v288
        %v845 = vsel %vm786, %v843, 0.0
        %846 = vadd.xlane.f32.xlu0 %v845
        %v847 = vpop.xlane.xlu0 %846
        %v848 = vadd.f32 %v844, %v847
        %v849 = vmul.f32 %v840, %v289
        %v850 = vpack.c.bf16 %v843, %v843
        %v852 = vsel %vm786, %v850, 0
        %vm854 = vcmask 1043456
        %v856 = vsel %vm854, %v785, 0
        %858 = vmatprep.subr.bf16.mxu0 0
        %859 = vmatpush1.bf16.msra.mxu0 %v856
        %860 = vmatprep.subr.bf16.mxu0 0
        %861 = vmatpush1.bf16.msra.mxu0 0
        %862 = vmatprep.subr.bf16.mxu0 0
        %863 = vmatpush1.bf16.msra.mxu0 0
        %864 = vmatprep.subr.bf16.mxu0 0
        %865 = vmatpush1.bf16.msra.mxu0 0
        %866 = vmatprep.subr.bf16.mxu0 0
        %867 = vmatpush1.bf16.msra.mxu0 0
        %868 = vmatprep.subr.bf16.mxu0 0
        %869 = vmatpush1.bf16.msra.mxu0 0
        %870 = vmatprep.subr.bf16.mxu0 0
        %871 = vmatpush1.bf16.msra.mxu0 0
        %872 = vmatprep.subr.bf16.mxu0 0
        %873 = vmatpush1.bf16.msra.mxu0 0
        %874 = vmatprep.subr.bf16.mxu0 0
        %875 = vmatpush1.bf16.msra.mxu0 0
        %876 = vmatprep.subr.bf16.mxu0 0
        %877 = vmatpush1.bf16.msra.mxu0 0
        %878 = vmatprep.subr.bf16.mxu0 0
        %879 = vmatpush1.bf16.msra.mxu0 0
        %880 = vmatprep.subr.bf16.mxu0 0
        %881 = vmatpush1.bf16.msra.mxu0 0
        %882 = vmatprep.subr.bf16.mxu0 0
        %883 = vmatpush1.bf16.msra.mxu0 0
        %884 = vmatprep.subr.bf16.mxu0 0
        %885 = vmatpush1.bf16.msra.mxu0 0
        %886 = vmatprep.subr.bf16.mxu0 0
        %887 = vmatpush1.bf16.msra.mxu0 0
        %888 = vmatprep.subr.bf16.mxu0 0
        %889 = vmatpush1.bf16.msra.mxu0 0
        %890 = vmatprep.mubr.bf16.mxu0 0
        %891 = vmatmul.mubr.bf16.gmra.mrb[0].mxu0 %v852
        %v892 = vpop.f32.mrb[0].mxu0
        %v893 = vadd.f32 0.0, %v892
        %v894 = vpop.f32.mrb[0].mxu0
        %v895 = vpop.f32.mrb[0].mxu0
        %v896 = vpop.f32.mrb[0].mxu0
        %897 = vdwg.mxu0
        %v898 = vadd.f32 %v849, %v893
        %v900 = vunpack.c.l.b16 %v275
        %v901 = vpack.c.b16 %v900, %v900
        %902 = vrot.lane.b32.xlu0 %v901, 120
        %v903 = vpop.permute.xlu0 %902
        %v905 = vunpack.c.l.b16 %v782
        %v906 = vpack.c.b16 %v905, %v905
        %907 = vrot.lane.b32.xlu0 %v906, 120
        %v908 = vpop.permute.xlu0 %907
        %v910 = vsel %vm786, %v903, 0
        %v913 = vsel %vm786, %v908, 0
        %915 = vmatprep.subr.bf16.mxu0 0
        %916 = vmatpush1.bf16.xpose.msra.mxu0 %v913
        %917 = vmatprep.subr.bf16.mxu0 0
        %918 = vmatpush1.bf16.xpose.msra.mxu0 0
        %919 = vmatprep.subr.bf16.mxu0 0
        %920 = vmatpush1.bf16.xpose.msra.mxu0 0
        %921 = vmatprep.subr.bf16.mxu0 0
        %922 = vmatpush1.bf16.xpose.msra.mxu0 0
        %923 = vmatprep.subr.bf16.mxu0 0
        %924 = vmatpush1.bf16.xpose.msra.mxu0 0
        %925 = vmatprep.subr.bf16.mxu0 0
        %926 = vmatpush1.bf16.xpose.msra.mxu0 0
        %927 = vmatprep.subr.bf16.mxu0 0
        %928 = vmatpush1.bf16.xpose.msra.mxu0 0
        %929 = vmatprep.subr.bf16.mxu0 0
        %930 = vmatpush1.bf16.xpose.msra.mxu0 0
        %931 = vmatprep.subr.bf16.mxu0 0
        %932 = vmatpush1.bf16.xpose.msra.mxu0 0
        %933 = vmatprep.subr.bf16.mxu0 0
        %934 = vmatpush1.bf16.xpose.msra.mxu0 0
        %935 = vmatprep.subr.bf16.mxu0 0
        %936 = vmatpush1.bf16.xpose.msra.mxu0 0
        %937 = vmatprep.subr.bf16.mxu0 0
        %938 = vmatpush1.bf16.xpose.msra.mxu0 0
        %939 = vmatprep.subr.bf16.mxu0 0
        %940 = vmatpush1.bf16.xpose.msra.mxu0 0
        %941 = vmatprep.subr.bf16.mxu0 0
        %942 = vmatpush1.bf16.xpose.msra.mxu0 0
        %943 = vmatprep.subr.bf16.mxu0 0
        %944 = vmatpush1.bf16.xpose.msra.mxu0 0
        %945 = vmatprep.subr.bf16.mxu0 0
        %946 = vmatpush1.bf16.xpose.msra.mxu0 0
        %947 = vmatprep.mubr.bf16.mxu0 0
        %948 = vmatmul.mubr.bf16.gmra.mrb[0].mxu0 %v910
        %v949 = vpop.f32.mrb[0].mxu0
        %v950 = vadd.f32 0.0, %v949
        %v951 = vpop.f32.mrb[0].mxu0
        %v952 = vpop.f32.mrb[0].mxu0
        %v953 = vpop.f32.mrb[0].mxu0
        %954 = vdwg.mxu0
        %v955 = vsel %vm280, -1e+30, %v950
        %v956 = vsel %vm786, %v955, -inf
        %957 = vmax.xlane.f32.xlu0 %v956
        %v958 = vpop.xlane.xlu0 %957
        %v959 = vmax.f32 %v290, %v958
        %v960 = vsub.f32 %v290, %v959
        %v961 = vmul.f32 %v960, 1.442695
        %v962 = vpow.pop %v961
        %v963 = vsub.f32 %v955, %v959
        %v964 = vmul.f32 %v963, 1.442695
        %v965 = vpow.pop %v964
        %v966 = vmul.f32 %v962, %v291
        %v967 = vsel %vm786, %v965, 0.0
        %968 = vadd.xlane.f32.xlu0 %v967
        %v969 = vpop.xlane.xlu0 %968
        %v970 = vadd.f32 %v966, %v969
        %v971 = vmul.f32 %v962, %v292
        %v972 = vpack.c.bf16 %v965, %v965
        %v974 = vunpack.c.l.b16 %v785
        %v975 = vpack.c.b16 %v974, %v974
        %976 = vrot.lane.b32.xlu0 %v975, 120
        %v977 = vpop.permute.xlu0 %976
        %v979 = vsel %vm786, %v972, 0
        %v982 = vsel %vm854, %v977, 0
        %984 = vmatprep.subr.bf16.mxu0 0
        %985 = vmatpush1.bf16.msra.mxu0 %v982
        %986 = vmatprep.subr.bf16.mxu0 0
        %987 = vmatpush1.bf16.msra.mxu0 0
        %988 = vmatprep.subr.bf16.mxu0 0
        %989 = vmatpush1.bf16.msra.mxu0 0
        %990 = vmatprep.subr.bf16.mxu0 0
        %991 = vmatpush1.bf16.msra.mxu0 0
        %992 = vmatprep.subr.bf16.mxu0 0
        %993 = vmatpush1.bf16.msra.mxu0 0
        %994 = vmatprep.subr.bf16.mxu0 0
        %995 = vmatpush1.bf16.msra.mxu0 0
        %996 = vmatprep.subr.bf16.mxu0 0
        %997 = vmatpush1.bf16.msra.mxu0 0
        %998 = vmatprep.subr.bf16.mxu0 0
        %999 = vmatpush1.bf16.msra.mxu0 0
        %1000 = vmatprep.subr.bf16.mxu0 0
        %1001 = vmatpush1.bf16.msra.mxu0 0
        %1002 = vmatprep.subr.bf16.mxu0 0
        %1003 = vmatpush1.bf16.msra.mxu0 0
        %1004 = vmatprep.subr.bf16.mxu0 0
        %1005 = vmatpush1.bf16.msra.mxu0 0
        %1006 = vmatprep.subr.bf16.mxu0 0
        %1007 = vmatpush1.bf16.msra.mxu0 0
        %1008 = vmatprep.subr.bf16.mxu0 0
        %1009 = vmatpush1.bf16.msra.mxu0 0
        %1010 = vmatprep.subr.bf16.mxu0 0
        %1011 = vmatpush1.bf16.msra.mxu0 0
        %1012 = vmatprep.subr.bf16.mxu0 0
        %1013 = vmatpush1.bf16.msra.mxu0 0
        %1014 = vmatprep.subr.bf16.mxu0 0
        %1015 = vmatpush1.bf16.msra.mxu0 0
        %1016 = vmatprep.mubr.bf16.mxu0 0
        %1017 = vmatmul.mubr.bf16.gmra.mrb[0].mxu0 %v979
        %v1018 = vpop.f32.mrb[0].mxu0
        %v1019 = vadd.f32 0.0, %v1018
        %v1020 = vpop.f32.mrb[0].mxu0
        %v1021 = vpop.f32.mrb[0].mxu0
        %v1022 = vpop.f32.mrb[0].mxu0
        %1023 = vdwg.mxu0
        %v1024 = vadd.f32 %v971, %v1019
        %1025 = vrot.lane.b32.xlu0 %v901, 112
        %v1026 = vpop.permute.xlu0 %1025
        %1027 = vrot.lane.b32.xlu0 %v906, 112
        %v1028 = vpop.permute.xlu0 %1027
        %v1030 = vsel %vm786, %v1026, 0
        %v1033 = vsel %vm786, %v1028, 0
        %1035 = vmatprep.subr.bf16.mxu0 0
        %1036 = vmatpush1.bf16.xpose.msra.mxu0 %v1033
        %1037 = vmatprep.subr.bf16.mxu0 0
        %1038 = vmatpush1.bf16.xpose.msra.mxu0 0
        %1039 = vmatprep.subr.bf16.mxu0 0
        %1040 = vmatpush1.bf16.xpose.msra.mxu0 0
        %1041 = vmatprep.subr.bf16.mxu0 0
        %1042 = vmatpush1.bf16.xpose.msra.mxu0 0
        %1043 = vmatprep.subr.bf16.mxu0 0
        %1044 = vmatpush1.bf16.xpose.msra.mxu0 0
        %1045 = vmatprep.subr.bf16.mxu0 0
        %1046 = vmatpush1.bf16.xpose.msra.mxu0 0
        %1047 = vmatprep.subr.bf16.mxu0 0
        %1048 = vmatpush1.bf16.xpose.msra.mxu0 0
        %1049 = vmatprep.subr.bf16.mxu0 0
        %1050 = vmatpush1.bf16.xpose.msra.mxu0 0
        %1051 = vmatprep.subr.bf16.mxu0 0
        %1052 = vmatpush1.bf16.xpose.msra.mxu0 0
        %1053 = vmatprep.subr.bf16.mxu0 0
        %1054 = vmatpush1.bf16.xpose.msra.mxu0 0
        %1055 = vmatprep.subr.bf16.mxu0 0
        %1056 = vmatpush1.bf16.xpose.msra.mxu0 0
        %1057 = vmatprep.subr.bf16.mxu0 0
        %1058 = vmatpush1.bf16.xpose.msra.mxu0 0
        %1059 = vmatprep.subr.bf16.mxu0 0
        %1060 = vmatpush1.bf16.xpose.msra.mxu0 0
        %1061 = vmatprep.subr.bf16.mxu0 0
        %1062 = vmatpush1.bf16.xpose.msra.mxu0 0
        %1063 = vmatprep.subr.bf16.mxu0 0
        %1064 = vmatpush1.bf16.xpose.msra.mxu0 0
        %1065 = vmatprep.subr.bf16.mxu0 0
        %1066 = vmatpush1.bf16.xpose.msra.mxu0 0
        %1067 = vmatprep.mubr.bf16.mxu0 0
        %1068 = vmatmul.mubr.bf16.gmra.mrb[0].mxu0 %v1030
        %v1069 = vpop.f32.mrb[0].mxu0
        %v1070 = vadd.f32 0.0, %v1069
        %v1071 = vpop.f32.mrb[0].mxu0
        %v1072 = vpop.f32.mrb[0].mxu0
        %v1073 = vpop.f32.mrb[0].mxu0
        %1074 = vdwg.mxu0
        %v1075 = vsel %vm280, -1e+30, %v1070
        %v1076 = vsel %vm786, %v1075, -inf
        %1077 = vmax.xlane.f32.xlu0 %v1076
        %v1078 = vpop.xlane.xlu0 %1077
        %v1079 = vmax.f32 %v293, %v1078
        %v1080 = vsub.f32 %v293, %v1079
        %v1081 = vmul.f32 %v1080, 1.442695
        %v1082 = vpow.pop %v1081
        %v1083 = vsub.f32 %v1075, %v1079
        %v1084 = vmul.f32 %v1083, 1.442695
        %v1085 = vpow.pop %v1084
        %v1086 = vmul.f32 %v1082, %v294
        %v1087 = vsel %vm786, %v1085, 0.0
        %1088 = vadd.xlane.f32.xlu0 %v1087
        %v1089 = vpop.xlane.xlu0 %1088
        %v1090 = vadd.f32 %v1086, %v1089
        %v1091 = vmul.f32 %v1082, %v295
        %v1092 = vpack.c.bf16 %v1085, %v1085
        %1093 = vrot.lane.b32.xlu0 %v975, 112
        %v1094 = vpop.permute.xlu0 %1093
        %v1096 = vsel %vm786, %v1092, 0
        %v1099 = vsel %vm854, %v1094, 0
        %1101 = vmatprep.subr.bf16.mxu0 0
        %1102 = vmatpush1.bf16.msra.mxu0 %v1099
        %1103 = vmatprep.subr.bf16.mxu0 0
        %1104 = vmatpush1.bf16.msra.mxu0 0
        %1105 = vmatprep.subr.bf16.mxu0 0
        %1106 = vmatpush1.bf16.msra.mxu0 0
        %1107 = vmatprep.subr.bf16.mxu0 0
        %1108 = vmatpush1.bf16.msra.mxu0 0
        %1109 = vmatprep.subr.bf16.mxu0 0
        %1110 = vmatpush1.bf16.msra.mxu0 0
        %1111 = vmatprep.subr.bf16.mxu0 0
        %1112 = vmatpush1.bf16.msra.mxu0 0
        %1113 = vmatprep.subr.bf16.mxu0 0
        %1114 = vmatpush1.bf16.msra.mxu0 0
        %1115 = vmatprep.subr.bf16.mxu0 0
        %1116 = vmatpush1.bf16.msra.mxu0 0
        %1117 = vmatprep.subr.bf16.mxu0 0
        %1118 = vmatpush1.bf16.msra.mxu0 0
        %1119 = vmatprep.subr.bf16.mxu0 0
        %1120 = vmatpush1.bf16.msra.mxu0 0
        %1121 = vmatprep.subr.bf16.mxu0 0
        %1122 = vmatpush1.bf16.msra.mxu0 0
        %1123 = vmatprep.subr.bf16.mxu0 0
        %1124 = vmatpush1.bf16.msra.mxu0 0
        %1125 = vmatprep.subr.bf16.mxu0 0
        %1126 = vmatpush1.bf16.msra.mxu0 0
        %1127 = vmatprep.subr.bf16.mxu0 0
        %1128 = vmatpush1.bf16.msra.mxu0 0
        %1129 = vmatprep.subr.bf16.mxu0 0
        %1130 = vmatpush1.bf16.msra.mxu0 0
        %1131 = vmatprep.subr.bf16.mxu0 0
        %1132 = vmatpush1.bf16.msra.mxu0 0
        %1133 = vmatprep.mubr.bf16.mxu0 0
        %1134 = vmatmul.mubr.bf16.gmra.mrb[0].mxu0 %v1096
        %v1135 = vpop.f32.mrb[0].mxu0
        %v1136 = vadd.f32 0.0, %v1135
        %v1137 = vpop.f32.mrb[0].mxu0
        %v1138 = vpop.f32.mrb[0].mxu0
        %v1139 = vpop.f32.mrb[0].mxu0
        %1140 = vdwg.mxu0
        %v1141 = vadd.f32 %v1091, %v1136
        %1142 = vrot.lane.b32.xlu0 %v901, 104
        %v1143 = vpop.permute.xlu0 %1142
        %1144 = vrot.lane.b32.xlu0 %v906, 104
        %v1145 = vpop.permute.xlu0 %1144
        %v1147 = vsel %vm786, %v1143, 0
        %v1150 = vsel %vm786, %v1145, 0
        %1152 = vmatprep.subr.bf16.mxu0 0
        %1153 = vmatpush1.bf16.xpose.msra.mxu0 %v1150
        %1154 = vmatprep.subr.bf16.mxu0 0
        %1155 = vmatpush1.bf16.xpose.msra.mxu0 0
        %1156 = vmatprep.subr.bf16.mxu0 0
        %1157 = vmatpush1.bf16.xpose.msra.mxu0 0
        %1158 = vmatprep.subr.bf16.mxu0 0
        %1159 = vmatpush1.bf16.xpose.msra.mxu0 0
        %1160 = vmatprep.subr.bf16.mxu0 0
        %1161 = vmatpush1.bf16.xpose.msra.mxu0 0
        %1162 = vmatprep.subr.bf16.mxu0 0
        %1163 = vmatpush1.bf16.xpose.msra.mxu0 0
        %1164 = vmatprep.subr.bf16.mxu0 0
        %1165 = vmatpush1.bf16.xpose.msra.mxu0 0
        %1166 = vmatprep.subr.bf16.mxu0 0
        %1167 = vmatpush1.bf16.xpose.msra.mxu0 0
        %1168 = vmatprep.subr.bf16.mxu0 0
        %1169 = vmatpush1.bf16.xpose.msra.mxu0 0
        %1170 = vmatprep.subr.bf16.mxu0 0
        %1171 = vmatpush1.bf16.xpose.msra.mxu0 0
        %1172 = vmatprep.subr.bf16.mxu0 0
        %1173 = vmatpush1.bf16.xpose.msra.mxu0 0
        %1174 = vmatprep.subr.bf16.mxu0 0
        %1175 = vmatpush1.bf16.xpose.msra.mxu0 0
        %1176 = vmatprep.subr.bf16.mxu0 0
        %1177 = vmatpush1.bf16.xpose.msra.mxu0 0
        %1178 = vmatprep.subr.bf16.mxu0 0
        %1179 = vmatpush1.bf16.xpose.msra.mxu0 0
        %1180 = vmatprep.subr.bf16.mxu0 0
        %1181 = vmatpush1.bf16.xpose.msra.mxu0 0
        %1182 = vmatprep.subr.bf16.mxu0 0
        %1183 = vmatpush1.bf16.xpose.msra.mxu0 0
        %1184 = vmatprep.mubr.bf16.mxu0 0
        %1185 = vmatmul.mubr.bf16.gmra.mrb[0].mxu0 %v1147
        %v1186 = vpop.f32.mrb[0].mxu0
        %v1187 = vadd.f32 0.0, %v1186
        %v1188 = vpop.f32.mrb[0].mxu0
        %v1189 = vpop.f32.mrb[0].mxu0
        %v1190 = vpop.f32.mrb[0].mxu0
        %1191 = vdwg.mxu0
        %v1192 = vsel %vm280, -1e+30, %v1187
        %v1193 = vsel %vm786, %v1192, -inf
        %1194 = vmax.xlane.f32.xlu0 %v1193
        %v1195 = vpop.xlane.xlu0 %1194
        %v1196 = vmax.f32 %v296, %v1195
        %v1197 = vsub.f32 %v296, %v1196
        %v1198 = vmul.f32 %v1197, 1.442695
        %v1199 = vpow.pop %v1198
        %v1200 = vsub.f32 %v1192, %v1196
        %v1201 = vmul.f32 %v1200, 1.442695
        %v1202 = vpow.pop %v1201
        %v1203 = vmul.f32 %v1199, %v297
        %v1204 = vsel %vm786, %v1202, 0.0
        %1205 = vadd.xlane.f32.xlu0 %v1204
        %v1206 = vpop.xlane.xlu0 %1205
        %v1207 = vadd.f32 %v1203, %v1206
        %v1208 = vmul.f32 %v1199, %v298
        %v1209 = vpack.c.bf16 %v1202, %v1202
        %1210 = vrot.lane.b32.xlu0 %v975, 104
        %v1211 = vpop.permute.xlu0 %1210
        %v1213 = vsel %vm786, %v1209, 0
        %v1216 = vsel %vm854, %v1211, 0
        %1218 = vmatprep.subr.bf16.mxu0 0
        %1219 = vmatpush1.bf16.msra.mxu0 %v1216
        %1220 = vmatprep.subr.bf16.mxu0 0
        %1221 = vmatpush1.bf16.msra.mxu0 0
        %1222 = vmatprep.subr.bf16.mxu0 0
        %1223 = vmatpush1.bf16.msra.mxu0 0
        %1224 = vmatprep.subr.bf16.mxu0 0
        %1225 = vmatpush1.bf16.msra.mxu0 0
        %1226 = vmatprep.subr.bf16.mxu0 0
        %1227 = vmatpush1.bf16.msra.mxu0 0
        %1228 = vmatprep.subr.bf16.mxu0 0
        %1229 = vmatpush1.bf16.msra.mxu0 0
        %1230 = vmatprep.subr.bf16.mxu0 0
        %1231 = vmatpush1.bf16.msra.mxu0 0
        %1232 = vmatprep.subr.bf16.mxu0 0
        %1233 = vmatpush1.bf16.msra.mxu0 0
        %1234 = vmatprep.subr.bf16.mxu0 0
        %1235 = vmatpush1.bf16.msra.mxu0 0
        %1236 = vmatprep.subr.bf16.mxu0 0
        %1237 = vmatpush1.bf16.msra.mxu0 0
        %1238 = vmatprep.subr.bf16.mxu0 0
        %1239 = vmatpush1.bf16.msra.mxu0 0
        %1240 = vmatprep.subr.bf16.mxu0 0
        %1241 = vmatpush1.bf16.msra.mxu0 0
        %1242 = vmatprep.subr.bf16.mxu0 0
        %1243 = vmatpush1.bf16.msra.mxu0 0
        %1244 = vmatprep.subr.bf16.mxu0 0
        %1245 = vmatpush1.bf16.msra.mxu0 0
        %1246 = vmatprep.subr.bf16.mxu0 0
        %1247 = vmatpush1.bf16.msra.mxu0 0
        %1248 = vmatprep.subr.bf16.mxu0 0
        %1249 = vmatpush1.bf16.msra.mxu0 0
        %1250 = vmatprep.mubr.bf16.mxu0 0
        %1251 = vmatmul.mubr.bf16.gmra.mrb[0].mxu0 %v1213
        %v1252 = vpop.f32.mrb[0].mxu0
        %v1253 = vadd.f32 0.0, %v1252
        %v1254 = vpop.f32.mrb[0].mxu0
        %v1255 = vpop.f32.mrb[0].mxu0
        %v1256 = vpop.f32.mrb[0].mxu0
        %1257 = vdwg.mxu0
        %v1258 = vadd.f32 %v1208, %v1253
        %v1259 = vrcp.pop %v848
        %v1260 = vmul.f32 %v898, %v1259
        %v1261 = vpack.c.bf16 %v1260, %v1260
        %vm1262 = vcmask 60416
        %1263 = vst.msk [vmem:[%s273] sm:$0xf] %vm1262, %v1261
        %v1264 = vrcp.pop %v970
        %v1265 = vmul.f32 %v1024, %v1264
        %v1266 = vpack.c.bf16 %v1265, %v1265
        %v1268 = vunpack.c.l.b16 %v1266
        %v1269 = vpack.c.b16 %v1268, %v1268
        %1270 = vrot.lane.b32.xlu0 %v1269, 8
        %v1271 = vpop.permute.xlu0 %1270
        %vm1273 = vcmask 126016
        %1274 = vst.msk [vmem:[%s273] sm:$0xf] %vm1273, %v1271
        %v1275 = vrcp.pop %v1090
        %v1276 = vmul.f32 %v1141, %v1275
        %v1277 = vpack.c.bf16 %v1276, %v1276
        %v1279 = vunpack.c.l.b16 %v1277
        %v1280 = vpack.c.b16 %v1279, %v1279
        %1281 = vrot.lane.b32.xlu0 %v1280, 16
        %v1282 = vpop.permute.xlu0 %1281
        %vm1284 = vcmask 191616
        %1285 = vst.msk [vmem:[%s273] sm:$0xf] %vm1284, %v1282
        %v1286 = vrcp.pop %v1207
        %v1287 = vmul.f32 %v1258, %v1286
        %v1288 = vpack.c.bf16 %v1287, %v1287
        %v1290 = vunpack.c.l.b16 %v1288
        %v1291 = vpack.c.b16 %v1290, %v1290
        %1292 = vrot.lane.b32.xlu0 %v1291, 24
        %v1293 = vpop.permute.xlu0 %1292
        %vm1295 = vcmask 257216
        %1296 = vst.msk [vmem:[%s273] sm:$0xf] %vm1295, %v1293
        %s1297 = sand.u32 %s125, 1
        %s1298 = scalar_lea.sflag [#allocation4], %s1297
        %s1299 = sand.u32 %s125, 1
        %s1300 = smul.addr %s1299, 4
        %s1301 = scalar_lea.vmem [#allocation8], %s1300
        // Predicated region
        $region52: #{multi_head_attention.4} parent=31 // pred_check
          %p1302 = pneg %p135
        $region53: #{multi_head_attention.4} parent=31 // pred_check_branch
          %1304 = sbr.rel (%p1302) target = $region55
        $region54: #{multi_head_attention.4} parent=31 // pred_region
          %s1306 = ssub.s32 64, 64
          %1307 = vsyncadd %s1298, %s1306
          %s1308 = sadd.s32 %s28, %s27
          %s1309 = smul.addr %s1308, 64
          %s1310 = scalar_lea.hbm %s3, %s1309
          %s1312 = sshll.u32 %s1301, 4
          %s1313 = int_to_ptr.vmem [resolvable:$true] %s1312
          %1315 = dma.vmem_to_hbm [thread:$0]  %s1313, 64, %s1310, %s1298
        $region55: #{multi_head_attention.4} parent=31 // pred_fallthru
          _
      $region32: #{multi_head_attention.4} parent=5 // pred_fallthru
        _
      %p1316 = scmp.le.s32.totalorder 2, %s18
      // Predicated region
      $region56: #{multi_head_attention.4} parent=5 // pred_check
        %p1317 = pneg %p1316
      $region57: #{multi_head_attention.4} parent=5 // pred_check_branch
        %1319 = sbr.rel (%p1317) target = $region59
      $region58: #{multi_head_attention.4} parent=5 // pred_region
        %s1320 = ssub.s32 %s18, 2
        // Predicated region
        $region60: #{multi_head_attention.4} parent=58 // pred_check
          %p1321 = pneg %p141
        $region61: #{multi_head_attention.4} parent=58 // pred_check_branch
          %1323 = sbr.rel (%p1321) target = $region63
        $region62: #{multi_head_attention.4} parent=58 // pred_region
          %s1324 = sand.u32 %s126, 1
          %s1325 = scalar_lea.sflag [#allocation4], %s1324
          %s1326 = sand.u32 %s126, 1
          %s1327 = smul.addr %s1326, 4
          %s1328 = scalar_lea.vmem [#allocation8], %s1327
          %1329 = dma.done %s1325, 64
        $region63: #{multi_head_attention.4} parent=58 // pred_fallthru
          _
      $region59: #{multi_head_attention.4} parent=5 // pred_fallthru
        _
    $region6: #{multi_head_attention.4} parent=1 // loop_footer
      %s22 = sadd.s32 1, %s18
    $region7: #{multi_head_attention.4} parent=1 // loop_footer_branch
      %17 = sbr.rel target = $region3
    $region8: #{multi_head_attention.4} parent=1 // loop_exit
      _
    %1330 = vsyncpa [#allocation3], 1
    %s1331 = scalar_lea.sflag [#allocation3], 1
    %1332 = vsyncpa %s1331, 1
    %1333 = vsyncpa [#allocation6], 1
    %s1334 = scalar_lea.sflag [#allocation6], 1
    %1335 = vsyncpa %s1334, 1
    %1336 = vsyncpa [#allocation4], 1
    %s1337 = scalar_lea.sflag [#allocation4], 1
    %1338 = vsyncpa %s1337, 1

</llo_original>
